<compile_context>
chip_gen: v7x
topology: tpu7x:2x2x1
jax: 0.10.0
libtpu: 0.0.40
codegen_flags: <defaults>
</compile_context>

<pallas_src>
import numpy as np
import jax
import jax.numpy as jnp
from jax.experimental import pallas as pl
from jax.experimental.pallas import tpu as pltpu

# ---- small, module-consistent sizes (original: n_embd=384, heads=6, block_size=256) ----
B = 2            # batch
T = 16           # sequence length (<= block_size)
C = 64           # n_embd
NUM_HEADS = 4
HEAD_SIZE = C // NUM_HEADS
HIDDEN = 4 * C
LN_EPS = 1e-5
NEG_BIG = -1e30  # finite "minus infinity": no NaN from (-inf) - (-inf) on masked rows


def _layernorm(h, gamma, beta):
    # h: (T, C); gamma/beta: (1, C). Biased variance, eps=1e-5 (torch.nn.LayerNorm).
    mu = jnp.mean(h, axis=-1, keepdims=True)
    var = jnp.mean((h - mu) * (h - mu), axis=-1, keepdims=True)
    return (h - mu) * jax.lax.rsqrt(var + LN_EPS) * gamma + beta


def block_kernel(x_ref,
                 wqkv_ref,            # (C, 3C) bf16 : [Wq*C**-0.5 | Wk | Wv]
                 wp_ref, bp_ref,      # (C, C) bf16, (1, C) f32
                 w1_ref, b1_ref,      # (C, 4C) bf16, (1, 4C) f32
                 w2_ref, b2_ref,      # (4C, C) bf16, (1, C) f32
                 g1_ref, be1_ref,     # (1, C) f32 LN1
                 g2_ref, be2_ref,     # (1, C) f32 LN2
                 o_ref,               # (T, C) f32 output block (this sequence)
                 head_buf):           # (T, C) f32 VMEM scratch: concatenated head outputs
    x = x_ref[...]                    # (T, C) f32 — one sequence per grid step

    # ---------------- self-attention branch ----------------
    h1 = _layernorm(x, g1_ref[...], be1_ref[...])                       # f32
    qkv = jnp.dot(h1.astype(jnp.bfloat16), wqkv_ref[...],
                  preferred_element_type=jnp.float32)                   # (T, 3C), one MXU pass
    qkvb = qkv.astype(jnp.bfloat16)   # single bf16 cast of the whole slab (feeds all heads)

    # per-head score matmuls (inherently K=HEAD_SIZE), stacked into ONE (H, T, T) slab so the
    # mask / max / exp / reciprocal / cast run once over all heads instead of per tiny tile.
    s_heads = []
    for hd in range(NUM_HEADS):
        qs = slice(hd * HEAD_SIZE, (hd + 1) * HEAD_SIZE)
        ks = slice(C + hd * HEAD_SIZE, C + (hd + 1) * HEAD_SIZE)
        s_heads.append(jax.lax.dot_general(                              # q_h @ k_h^T
            qkvb[:, qs], qkvb[:, ks], (((1,), (1,)), ((), ())),
            preferred_element_type=jnp.float32))                         # (T, T) f32
    s3 = jnp.stack(s_heads, axis=0)                                      # (H, T, T)

    row = jax.lax.broadcasted_iota(jnp.int32, (T, T), 0)
    col = jax.lax.broadcasted_iota(jnp.int32, (T, T), 1)
    addmask = jnp.where(col <= row, jnp.float32(0.0), jnp.float32(NEG_BIG))
    s3 = s3 + addmask[None, :, :]                                        # one broadcast mask add
    s3 = s3 - jnp.max(s3, axis=-1, keepdims=True)                        # one row-max
    p3 = jnp.exp(s3)                                                     # one exp (EUP)
    p3 = p3 * pl.reciprocal(jnp.sum(p3, axis=-1, keepdims=True), approx=True)
    p3b = p3.astype(jnp.bfloat16)                                        # one bf16 cast

    # per-head value products written to a (T, C) scratch at static lane offsets,
    # then ONE full-depth K=C output-projection matmul.
    for hd in range(NUM_HEADS):
        cs = slice(hd * HEAD_SIZE, (hd + 1) * HEAD_SIZE)
        vs = slice(2 * C + hd * HEAD_SIZE, 2 * C + (hd + 1) * HEAD_SIZE)
        head_buf[:, cs] = jnp.dot(p3b[hd], qkvb[:, vs],
                                  preferred_element_type=jnp.float32)    # (T, hs)
    sa = jnp.dot(head_buf[...].astype(jnp.bfloat16), wp_ref[...],
                 preferred_element_type=jnp.float32) + bp_ref[...]       # (T, C)
    x1 = x + sa                                                          # residual 1 (dropout = identity)

    # ---------------- feed-forward branch ----------------
    h2 = _layernorm(x1, g2_ref[...], be2_ref[...])
    z = jnp.dot(h2.astype(jnp.bfloat16), w1_ref[...],
                preferred_element_type=jnp.float32) + b1_ref[...]
    z = jnp.maximum(z, 0.0)                                              # ReLU
    ff = jnp.dot(z.astype(jnp.bfloat16), w2_ref[...],
                 preferred_element_type=jnp.float32) + b2_ref[...]

    o_ref[...] = x1 + ff                                                 # residual 2 (dropout = identity)


def pack_params(params):
    """Fuse QKV into one weight (scale folded into Wq) and cast matmul weights to bf16 (once)."""
    (wq, wk, wv, wp, bp, w1, b1, w2, b2, g1, be1, g2, be2) = params
    scale = jnp.float32(C) ** -0.5        # PyTorch Head scales by C**-0.5 (n_embd); exact 0.125 here
    wqkv = jnp.concatenate([wq * scale, wk, wv], axis=1).astype(jnp.bfloat16)   # (C, 3C)
    return (wqkv,
            wp.astype(jnp.bfloat16), bp,
            w1.astype(jnp.bfloat16), b1,
            w2.astype(jnp.bfloat16), b2,
            g1, be1, g2, be2)


def block_forward(x, packed):
    x2d = x.reshape(B * T, C)              # fold batch outside the kernel (free in HBM)

    # full-array, resident-in-VMEM weight specs (constant index_map -> no per-step re-DMA)
    weight_specs = [pl.BlockSpec(p.shape, lambda i: (0, 0)) for p in packed]

    # advisory cost estimate (lets XLA overlap the custom call when embedded in a larger jit)
    flops = B * (2 * T * C * 3 * C          # fused QKV
                 + 4 * T * T * C            # scores + p@v over all heads
                 + 2 * T * C * C            # output projection
                 + 4 * T * C * HIDDEN)      # FFN (two matmuls)
    transcendentals = B * (NUM_HEADS * T * T + 2 * T)
    bytes_accessed = 2 * B * T * C * 4 + sum(
        int(np.prod(p.shape)) * p.dtype.itemsize for p in packed)

    out2d = pl.pallas_call(
        block_kernel,
        out_shape=jax.ShapeDtypeStruct((B * T, C), jnp.float32),
        grid=(B,),                                               # one sequence per grid step
        in_specs=[pl.BlockSpec((T, C), lambda i: (i, 0))] + weight_specs,
        out_specs=pl.BlockSpec((T, C), lambda i: (i, 0)),
        scratch_shapes=[pltpu.VMEM((T, C), jnp.float32)],        # concatenated head outputs
        compiler_params=pltpu.CompilerParams(
            dimension_semantics=("parallel",)),                  # shards across v7x's 2 TCs
        cost_estimate=pl.CostEstimate(flops=int(flops),
                                      transcendentals=int(transcendentals),
                                      bytes_accessed=int(bytes_accessed)),
        input_output_aliases={0: 0},       # output has identical shape/dtype to (reshaped) x
    )(x2d, *packed)
    return out2d.reshape(B, T, C)


def make_params(key):
    ks = jax.random.split(key, 8)
    std = 0.02
    wq = jax.random.normal(ks[0], (C, C), jnp.float32) * std
    wk = jax.random.normal(ks[1], (C, C), jnp.float32) * std
    wv = jax.random.normal(ks[2], (C, C), jnp.float32) * std
    wp = jax.random.normal(ks[3], (C, C), jnp.float32) * std
    bp = jax.random.normal(ks[4], (1, C), jnp.float32) * std
    w1 = jax.random.normal(ks[5], (C, HIDDEN), jnp.float32) * std
    b1 = jax.random.normal(ks[6], (1, HIDDEN), jnp.float32) * std
    w2 = jax.random.normal(ks[7], (HIDDEN, C), jnp.float32) * std
    b2 = jnp.zeros((1, C), jnp.float32)
    g1 = jnp.ones((1, C), jnp.float32)    # LayerNorm default init
    be1 = jnp.zeros((1, C), jnp.float32)
    g2 = jnp.ones((1, C), jnp.float32)
    be2 = jnp.zeros((1, C), jnp.float32)
    return (wq, wk, wv, wp, bp, w1, b1, w2, b2, g1, be1, g2, be2)


def block_reference(x, params):
    """Pure-JAX f32 reference matching the PyTorch forward (eval mode)."""
    (wq, wk, wv, wp, bp, w1, b1, w2, b2, g1, be1, g2, be2) = params

    def ln(h, g, b):
        mu = jnp.mean(h, axis=-1, keepdims=True)
        var = jnp.mean((h - mu) ** 2, axis=-1, keepdims=True)
        return (h - mu) / jnp.sqrt(var + LN_EPS) * g + b

    h = ln(x, g1, be1)
    q = h @ wq
    k = h @ wk
    v = h @ wv
    qh = q.reshape(B, T, NUM_HEADS, HEAD_SIZE).transpose(0, 2, 1, 3)
    kh = k.reshape(B, T, NUM_HEADS, HEAD_SIZE).transpose(0, 2, 1, 3)
    vh = v.reshape(B, T, NUM_HEADS, HEAD_SIZE).transpose(0, 2, 1, 3)
    s = jnp.einsum("bhqd,bhkd->bhqk", qh, kh) * (C ** -0.5)
    mask = jnp.tril(jnp.ones((T, T), bool))
    s = jnp.where(mask, s, -jnp.inf)
    p = jax.nn.softmax(s, axis=-1)
    o = jnp.einsum("bhqk,bhkd->bhqd", p, vh).transpose(0, 2, 1, 3).reshape(B, T, C)
    x1 = x + (o @ wp + bp)
    h2 = ln(x1, g2, be2)
    ff = jnp.maximum(h2 @ w1 + b1, 0.0) @ w2 + b2
    return x1 + ff


if __name__ == "__main__":
    key = jax.random.PRNGKey(0)
    kx, kp = jax.random.split(key)
    x = jax.random.normal(kx, (B, T, C), jnp.float32)
    params = make_params(kp)
    packed = pack_params(params)

    ref = block_reference(x, params)          # exact f32 module semantics

    out = block_forward(x, packed)
    out = jax.block_until_ready(out)

    # Kernel uses bf16 MXU inputs with f32 accumulation (and approx softmax reciprocal)
    # -> bf16-appropriate tolerance.
    np.testing.assert_allclose(np.asarray(out), np.asarray(ref), atol=2e-2, rtol=2e-2)

    print("KERNEL_OK")
</pallas_src>

<mosaic_0001>
module attributes {stable_mosaic.version = 11 : i64} {
  func.func @block_kernel(%arg0: i32, %arg1: memref<16x64xf32, #tpu.memory_space<vmem>>, %arg2: memref<64x192xbf16, #tpu.memory_space<vmem>>, %arg3: memref<64x64xbf16, #tpu.memory_space<vmem>>, %arg4: memref<1x64xf32, #tpu.memory_space<vmem>>, %arg5: memref<64x256xbf16, #tpu.memory_space<vmem>>, %arg6: memref<1x256xf32, #tpu.memory_space<vmem>>, %arg7: memref<256x64xbf16, #tpu.memory_space<vmem>>, %arg8: memref<1x64xf32, #tpu.memory_space<vmem>>, %arg9: memref<1x64xf32, #tpu.memory_space<vmem>>, %arg10: memref<1x64xf32, #tpu.memory_space<vmem>>, %arg11: memref<1x64xf32, #tpu.memory_space<vmem>>, %arg12: memref<1x64xf32, #tpu.memory_space<vmem>>, %arg13: memref<16x64xf32, #tpu.memory_space<vmem>>, %arg14: memref<16x64xf32, #tpu.memory_space<vmem>>) attributes {dimension_semantics = [#tpu.dimension_semantics<parallel>], iteration_bounds = array<i64: 2>, scalar_prefetch = 0 : i64, scratch_operands = 1 : i64, tpu.core_type = #tpu.core_type<tc>, window_params = [{transform_indices = @transform_0, window_bounds = array<i64: 16, 64>}, {pipeline_mode = #tpu.pipeline_mode<synchronous>, transform_indices = @transform_1, window_bounds = array<i64: 64, 192>}, {pipeline_mode = #tpu.pipeline_mode<synchronous>, transform_indices = @transform_2, window_bounds = array<i64: 64, 64>}, {pipeline_mode = #tpu.pipeline_mode<synchronous>, transform_indices = @transform_3, window_bounds = array<i64: 1, 64>}, {pipeline_mode = #tpu.pipeline_mode<synchronous>, transform_indices = @transform_4, window_bounds = array<i64: 64, 256>}, {pipeline_mode = #tpu.pipeline_mode<synchronous>, transform_indices = @transform_5, window_bounds = array<i64: 1, 256>}, {pipeline_mode = #tpu.pipeline_mode<synchronous>, transform_indices = @transform_6, window_bounds = array<i64: 256, 64>}, {pipeline_mode = #tpu.pipeline_mode<synchronous>, transform_indices = @transform_7, window_bounds = array<i64: 1, 64>}, {pipeline_mode = #tpu.pipeline_mode<synchronous>, transform_indices = @transform_8, window_bounds = array<i64: 1, 64>}, {pipeline_mode = #tpu.pipeline_mode<synchronous>, transform_indices = @transform_9, window_bounds = array<i64: 1, 64>}, {pipeline_mode = #tpu.pipeline_mode<synchronous>, transform_indices = @transform_10, window_bounds = array<i64: 1, 64>}, {pipeline_mode = #tpu.pipeline_mode<synchronous>, transform_indices = @transform_11, window_bounds = array<i64: 1, 64>}, {transform_indices = @transform_12, window_bounds = array<i64: 16, 64>}]} {
    %c0 = arith.constant 0 : index
    %c0_0 = arith.constant 0 : index
    %0 = vector.load %arg1[%c0, %c0_0] : memref<16x64xf32, #tpu.memory_space<vmem>>, vector<16x64xf32>
    %c0_1 = arith.constant 0 : index
    %c0_2 = arith.constant 0 : index
    %1 = vector.load %arg9[%c0_1, %c0_2] : memref<1x64xf32, #tpu.memory_space<vmem>>, vector<1x64xf32>
    %c0_3 = arith.constant 0 : index
    %c0_4 = arith.constant 0 : index
    %2 = vector.load %arg10[%c0_3, %c0_4] : memref<1x64xf32, #tpu.memory_space<vmem>>, vector<1x64xf32>
    %cst = arith.constant dense<0.000000e+00> : vector<16xf32>
    %3 = vector.multi_reduction <add>, %0, %cst [1] : vector<16x64xf32> to vector<16xf32>
    %4 = vector.shape_cast %3 : vector<16xf32> to vector<16x1xf32>
    %cst_5 = arith.constant 6.400000e+01 : f32
    %5 = vector.broadcast %cst_5 : f32 to vector<16x1xf32>
    %6 = arith.divf %4, %5 : vector<16x1xf32>
    %7 = vector.broadcast %6 : vector<16x1xf32> to vector<16x64xf32>
    %8 = arith.subf %0, %7 : vector<16x64xf32>
    %9 = vector.broadcast %6 : vector<16x1xf32> to vector<16x64xf32>
    %10 = arith.subf %0, %9 : vector<16x64xf32>
    %11 = arith.mulf %8, %10 : vector<16x64xf32>
    %cst_6 = arith.constant dense<0.000000e+00> : vector<16xf32>
    %12 = vector.multi_reduction <add>, %11, %cst_6 [1] : vector<16x64xf32> to vector<16xf32>
    %13 = vector.shape_cast %12 : vector<16xf32> to vector<16x1xf32>
    %cst_7 = arith.constant 6.400000e+01 : f32
    %14 = vector.broadcast %cst_7 : f32 to vector<16x1xf32>
    %15 = arith.divf %13, %14 : vector<16x1xf32>
    %16 = vector.broadcast %6 : vector<16x1xf32> to vector<16x64xf32>
    %17 = arith.subf %0, %16 : vector<16x64xf32>
    %cst_8 = arith.constant 9.99999974E-6 : f32
    %18 = vector.broadcast %cst_8 : f32 to vector<16x1xf32>
    %19 = arith.addf %15, %18 : vector<16x1xf32>
    %20 = math.rsqrt %19 : vector<16x1xf32>
    %21 = vector.broadcast %20 : vector<16x1xf32> to vector<16x64xf32>
    %22 = arith.mulf %17, %21 : vector<16x64xf32>
    %23 = vector.broadcast %1 : vector<1x64xf32> to vector<16x64xf32>
    %24 = arith.mulf %22, %23 : vector<16x64xf32>
    %25 = vector.broadcast %2 : vector<1x64xf32> to vector<16x64xf32>
    %26 = arith.addf %24, %25 : vector<16x64xf32>
    %27 = arith.truncf %26 : vector<16x64xf32> to vector<16x64xbf16>
    %c0_9 = arith.constant 0 : index
    %c0_10 = arith.constant 0 : index
    %28 = vector.load %arg2[%c0_9, %c0_10] : memref<64x192xbf16, #tpu.memory_space<vmem>>, vector<64x192xbf16>
    %cst_11 = arith.constant dense<0.000000e+00> : vector<16x192xf32>
    %29 = tpu.matmul %27, %28, %cst_11 {dimension_numbers = #tpu.dot_dimension_numbers<[1], [0], [0], [1], [0, 0, 1, 1], [], []>} : vector<16x64xbf16>, vector<64x192xbf16>, vector<16x192xf32> -> vector<16x192xf32>
    %30 = arith.truncf %29 : vector<16x192xf32> to vector<16x192xbf16>
    %31 = vector.extract_strided_slice %30 {offsets = [0, 0], sizes = [16, 16], strides = [1, 1]} : vector<16x192xbf16> to vector<16x16xbf16>
    %32 = vector.extract_strided_slice %30 {offsets = [0, 64], sizes = [16, 16], strides = [1, 1]} : vector<16x192xbf16> to vector<16x16xbf16>
    %cst_12 = arith.constant dense<0.000000e+00> : vector<16x16xf32>
    %33 = tpu.matmul %31, %32, %cst_12 {dimension_numbers = #tpu.dot_dimension_numbers<[1], [1], [0], [0], [0, 0, 1, 0], [], []>} : vector<16x16xbf16>, vector<16x16xbf16>, vector<16x16xf32> -> vector<16x16xf32>
    %34 = vector.extract_strided_slice %30 {offsets = [0, 16], sizes = [16, 16], strides = [1, 1]} : vector<16x192xbf16> to vector<16x16xbf16>
    %35 = vector.extract_strided_slice %30 {offsets = [0, 80], sizes = [16, 16], strides = [1, 1]} : vector<16x192xbf16> to vector<16x16xbf16>
    %cst_13 = arith.constant dense<0.000000e+00> : vector<16x16xf32>
    %36 = tpu.matmul %34, %35, %cst_13 {dimension_numbers = #tpu.dot_dimension_numbers<[1], [1], [0], [0], [0, 0, 1, 0], [], []>} : vector<16x16xbf16>, vector<16x16xbf16>, vector<16x16xf32> -> vector<16x16xf32>
    %37 = vector.extract_strided_slice %30 {offsets = [0, 32], sizes = [16, 16], strides = [1, 1]} : vector<16x192xbf16> to vector<16x16xbf16>
    %38 = vector.extract_strided_slice %30 {offsets = [0, 96], sizes = [16, 16], strides = [1, 1]} : vector<16x192xbf16> to vector<16x16xbf16>
    %cst_14 = arith.constant dense<0.000000e+00> : vector<16x16xf32>
    %39 = tpu.matmul %37, %38, %cst_14 {dimension_numbers = #tpu.dot_dimension_numbers<[1], [1], [0], [0], [0, 0, 1, 0], [], []>} : vector<16x16xbf16>, vector<16x16xbf16>, vector<16x16xf32> -> vector<16x16xf32>
    %40 = vector.extract_strided_slice %30 {offsets = [0, 48], sizes = [16, 16], strides = [1, 1]} : vector<16x192xbf16> to vector<16x16xbf16>
    %41 = vector.extract_strided_slice %30 {offsets = [0, 112], sizes = [16, 16], strides = [1, 1]} : vector<16x192xbf16> to vector<16x16xbf16>
    %cst_15 = arith.constant dense<0.000000e+00> : vector<16x16xf32>
    %42 = tpu.matmul %40, %41, %cst_15 {dimension_numbers = #tpu.dot_dimension_numbers<[1], [1], [0], [0], [0, 0, 1, 0], [], []>} : vector<16x16xbf16>, vector<16x16xbf16>, vector<16x16xf32> -> vector<16x16xf32>
    %43 = vector.shape_cast %33 : vector<16x16xf32> to vector<1x16x16xf32>
    %44 = vector.shape_cast %36 : vector<16x16xf32> to vector<1x16x16xf32>
    %45 = vector.shape_cast %39 : vector<16x16xf32> to vector<1x16x16xf32>
    %46 = vector.shape_cast %42 : vector<16x16xf32> to vector<1x16x16xf32>
    %47 = tpu.concatenate %43, %44, %45, %46 in 0 : vector<1x16x16xf32>, vector<1x16x16xf32>, vector<1x16x16xf32>, vector<1x16x16xf32> -> vector<4x16x16xf32>
    %48 = tpu.iota {dimensions = array<i32: 0>} : vector<16x16xi32>
    %49 = tpu.iota {dimensions = array<i32: 1>} : vector<16x16xi32>
    %50 = arith.cmpi sle, %49, %48 : vector<16x16xi32>
    %cst_16 = arith.constant 0.000000e+00 : f32
    %cst_17 = arith.constant -1.000000e+30 : f32
    %51 = vector.broadcast %cst_16 : f32 to vector<16x16xf32>
    %52 = vector.broadcast %cst_17 : f32 to vector<16x16xf32>
    %53 = arith.select %50, %51, %52 : vector<16x16xi1>, vector<16x16xf32>
    %54 = vector.shape_cast %53 : vector<16x16xf32> to vector<1x16x16xf32>
    %55 = vector.broadcast %54 : vector<1x16x16xf32> to vector<4x16x16xf32>
    %56 = arith.addf %47, %55 : vector<4x16x16xf32>
    %cst_18 = arith.constant dense<0xFF800000> : vector<4x16xf32>
    %57 = vector.multi_reduction <maximumf>, %56, %cst_18 [2] : vector<4x16x16xf32> to vector<4x16xf32>
    %58 = vector.shape_cast %57 : vector<4x16xf32> to vector<4x16x1xf32>
    %59 = vector.broadcast %58 : vector<4x16x1xf32> to vector<4x16x16xf32>
    %60 = arith.subf %56, %59 : vector<4x16x16xf32>
    %61 = math.exp %60 : vector<4x16x16xf32>
    %cst_19 = arith.constant dense<0.000000e+00> : vector<4x16xf32>
    %62 = vector.multi_reduction <add>, %61, %cst_19 [2] : vector<4x16x16xf32> to vector<4x16xf32>
    %63 = vector.shape_cast %62 : vector<4x16xf32> to vector<4x16x1xf32>
    %64 = tpu.reciprocal %63 {approx = true} : vector<4x16x1xf32> -> vector<4x16x1xf32>
    %65 = vector.broadcast %64 : vector<4x16x1xf32> to vector<4x16x16xf32>
    %66 = arith.mulf %61, %65 : vector<4x16x16xf32>
    %67 = arith.truncf %66 : vector<4x16x16xf32> to vector<4x16x16xbf16>
    %68 = vector.extract_strided_slice %67 {offsets = [0, 0, 0], sizes = [1, 16, 16], strides = [1, 1, 1]} : vector<4x16x16xbf16> to vector<1x16x16xbf16>
    %69 = vector.shape_cast %68 : vector<1x16x16xbf16> to vector<16x16xbf16>
    %70 = vector.extract_strided_slice %30 {offsets = [0, 128], sizes = [16, 16], strides = [1, 1]} : vector<16x192xbf16> to vector<16x16xbf16>
    %cst_20 = arith.constant dense<0.000000e+00> : vector<16x16xf32>
    %71 = tpu.matmul %69, %70, %cst_20 {dimension_numbers = #tpu.dot_dimension_numbers<[1], [0], [0], [1], [0, 0, 1, 1], [], []>} : vector<16x16xbf16>, vector<16x16xbf16>, vector<16x16xf32> -> vector<16x16xf32>
    %c0_21 = arith.constant 0 : index
    %c0_22 = arith.constant 0 : index
    %72 = vector.load %arg14[%c0_21, %c0_22] : memref<16x64xf32, #tpu.memory_space<vmem>>, vector<16x16xf32>
    tpu.vector_store %arg14[%c0_21, %c0_22], %71 {strides = array<i32>} : memref<16x64xf32, #tpu.memory_space<vmem>>, vector<16x16xf32>,
    %73 = vector.extract_strided_slice %67 {offsets = [1, 0, 0], sizes = [1, 16, 16], strides = [1, 1, 1]} : vector<4x16x16xbf16> to vector<1x16x16xbf16>
    %74 = vector.shape_cast %73 : vector<1x16x16xbf16> to vector<16x16xbf16>
    %75 = vector.extract_strided_slice %30 {offsets = [0, 144], sizes = [16, 16], strides = [1, 1]} : vector<16x192xbf16> to vector<16x16xbf16>
    %cst_23 = arith.constant dense<0.000000e+00> : vector<16x16xf32>
    %76 = tpu.matmul %74, %75, %cst_23 {dimension_numbers = #tpu.dot_dimension_numbers<[1], [0], [0], [1], [0, 0, 1, 1], [], []>} : vector<16x16xbf16>, vector<16x16xbf16>, vector<16x16xf32> -> vector<16x16xf32>
    %c0_24 = arith.constant 0 : index
    %c16 = arith.constant 16 : index
    %77 = vector.load %arg14[%c0_24, %c16] : memref<16x64xf32, #tpu.memory_space<vmem>>, vector<16x16xf32>
    tpu.vector_store %arg14[%c0_24, %c16], %76 {strides = array<i32>} : memref<16x64xf32, #tpu.memory_space<vmem>>, vector<16x16xf32>,
    %78 = vector.extract_strided_slice %67 {offsets = [2, 0, 0], sizes = [1, 16, 16], strides = [1, 1, 1]} : vector<4x16x16xbf16> to vector<1x16x16xbf16>
    %79 = vector.shape_cast %78 : vector<1x16x16xbf16> to vector<16x16xbf16>
    %80 = vector.extract_strided_slice %30 {offsets = [0, 160], sizes = [16, 16], strides = [1, 1]} : vector<16x192xbf16> to vector<16x16xbf16>
    %cst_25 = arith.constant dense<0.000000e+00> : vector<16x16xf32>
    %81 = tpu.matmul %79, %80, %cst_25 {dimension_numbers = #tpu.dot_dimension_numbers<[1], [0], [0], [1], [0, 0, 1, 1], [], []>} : vector<16x16xbf16>, vector<16x16xbf16>, vector<16x16xf32> -> vector<16x16xf32>
    %c0_26 = arith.constant 0 : index
    %c32 = arith.constant 32 : index
    %82 = vector.load %arg14[%c0_26, %c32] : memref<16x64xf32, #tpu.memory_space<vmem>>, vector<16x16xf32>
    tpu.vector_store %arg14[%c0_26, %c32], %81 {strides = array<i32>} : memref<16x64xf32, #tpu.memory_space<vmem>>, vector<16x16xf32>,
    %83 = vector.extract_strided_slice %67 {offsets = [3, 0, 0], sizes = [1, 16, 16], strides = [1, 1, 1]} : vector<4x16x16xbf16> to vector<1x16x16xbf16>
    %84 = vector.shape_cast %83 : vector<1x16x16xbf16> to vector<16x16xbf16>
    %85 = vector.extract_strided_slice %30 {offsets = [0, 176], sizes = [16, 16], strides = [1, 1]} : vector<16x192xbf16> to vector<16x16xbf16>
    %cst_27 = arith.constant dense<0.000000e+00> : vector<16x16xf32>
    %86 = tpu.matmul %84, %85, %cst_27 {dimension_numbers = #tpu.dot_dimension_numbers<[1], [0], [0], [1], [0, 0, 1, 1], [], []>} : vector<16x16xbf16>, vector<16x16xbf16>, vector<16x16xf32> -> vector<16x16xf32>
    %c0_28 = arith.constant 0 : index
    %c48 = arith.constant 48 : index
    %87 = vector.load %arg14[%c0_28, %c48] : memref<16x64xf32, #tpu.memory_space<vmem>>, vector<16x16xf32>
    tpu.vector_store %arg14[%c0_28, %c48], %86 {strides = array<i32>} : memref<16x64xf32, #tpu.memory_space<vmem>>, vector<16x16xf32>,
    %c0_29 = arith.constant 0 : index
    %c0_30 = arith.constant 0 : index
    %88 = vector.load %arg14[%c0_29, %c0_30] : memref<16x64xf32, #tpu.memory_space<vmem>>, vector<16x64xf32>
    %89 = arith.truncf %88 : vector<16x64xf32> to vector<16x64xbf16>
    %c0_31 = arith.constant 0 : index
    %c0_32 = arith.constant 0 : index
    %90 = vector.load %arg3[%c0_31, %c0_32] : memref<64x64xbf16, #tpu.memory_space<vmem>>, vector<64x64xbf16>
    %cst_33 = arith.constant dense<0.000000e+00> : vector<16x64xf32>
    %91 = tpu.matmul %89, %90, %cst_33 {dimension_numbers = #tpu.dot_dimension_numbers<[1], [0], [0], [1], [0, 0, 1, 1], [], []>} : vector<16x64xbf16>, vector<64x64xbf16>, vector<16x64xf32> -> vector<16x64xf32>
    %c0_34 = arith.constant 0 : index
    %c0_35 = arith.constant 0 : index
    %92 = vector.load %arg4[%c0_34, %c0_35] : memref<1x64xf32, #tpu.memory_space<vmem>>, vector<1x64xf32>
    %93 = vector.broadcast %92 : vector<1x64xf32> to vector<16x64xf32>
    %94 = arith.addf %91, %93 : vector<16x64xf32>
    %95 = arith.addf %0, %94 : vector<16x64xf32>
    %c0_36 = arith.constant 0 : index
    %c0_37 = arith.constant 0 : index
    %96 = vector.load %arg11[%c0_36, %c0_37] : memref<1x64xf32, #tpu.memory_space<vmem>>, vector<1x64xf32>
    %c0_38 = arith.constant 0 : index
    %c0_39 = arith.constant 0 : index
    %97 = vector.load %arg12[%c0_38, %c0_39] : memref<1x64xf32, #tpu.memory_space<vmem>>, vector<1x64xf32>
    %cst_40 = arith.constant dense<0.000000e+00> : vector<16xf32>
    %98 = vector.multi_reduction <add>, %95, %cst_40 [1] : vector<16x64xf32> to vector<16xf32>
    %99 = vector.shape_cast %98 : vector<16xf32> to vector<16x1xf32>
    %cst_41 = arith.constant 6.400000e+01 : f32
    %100 = vector.broadcast %cst_41 : f32 to vector<16x1xf32>
    %101 = arith.divf %99, %100 : vector<16x1xf32>
    %102 = vector.broadcast %101 : vector<16x1xf32> to vector<16x64xf32>
    %103 = arith.subf %95, %102 : vector<16x64xf32>
    %104 = vector.broadcast %101 : vector<16x1xf32> to vector<16x64xf32>
    %105 = arith.subf %95, %104 : vector<16x64xf32>
    %106 = arith.mulf %103, %105 : vector<16x64xf32>
    %cst_42 = arith.constant dense<0.000000e+00> : vector<16xf32>
    %107 = vector.multi_reduction <add>, %106, %cst_42 [1] : vector<16x64xf32> to vector<16xf32>
    %108 = vector.shape_cast %107 : vector<16xf32> to vector<16x1xf32>
    %cst_43 = arith.constant 6.400000e+01 : f32
    %109 = vector.broadcast %cst_43 : f32 to vector<16x1xf32>
    %110 = arith.divf %108, %109 : vector<16x1xf32>
    %111 = vector.broadcast %101 : vector<16x1xf32> to vector<16x64xf32>
    %112 = arith.subf %95, %111 : vector<16x64xf32>
    %cst_44 = arith.constant 9.99999974E-6 : f32
    %113 = vector.broadcast %cst_44 : f32 to vector<16x1xf32>
    %114 = arith.addf %110, %113 : vector<16x1xf32>
    %115 = math.rsqrt %114 : vector<16x1xf32>
    %116 = vector.broadcast %115 : vector<16x1xf32> to vector<16x64xf32>
    %117 = arith.mulf %112, %116 : vector<16x64xf32>
    %118 = vector.broadcast %96 : vector<1x64xf32> to vector<16x64xf32>
    %119 = arith.mulf %117, %118 : vector<16x64xf32>
    %120 = vector.broadcast %97 : vector<1x64xf32> to vector<16x64xf32>
    %121 = arith.addf %119, %120 : vector<16x64xf32>
    %122 = arith.truncf %121 : vector<16x64xf32> to vector<16x64xbf16>
    %c0_45 = arith.constant 0 : index
    %c0_46 = arith.constant 0 : index
    %123 = vector.load %arg5[%c0_45, %c0_46] : memref<64x256xbf16, #tpu.memory_space<vmem>>, vector<64x256xbf16>
    %cst_47 = arith.constant dense<0.000000e+00> : vector<16x256xf32>
    %124 = tpu.matmul %122, %123, %cst_47 {dimension_numbers = #tpu.dot_dimension_numbers<[1], [0], [0], [1], [0, 0, 1, 1], [], []>} : vector<16x64xbf16>, vector<64x256xbf16>, vector<16x256xf32> -> vector<16x256xf32>
    %c0_48 = arith.constant 0 : index
    %c0_49 = arith.constant 0 : index
    %125 = vector.load %arg6[%c0_48, %c0_49] : memref<1x256xf32, #tpu.memory_space<vmem>>, vector<1x256xf32>
    %126 = vector.broadcast %125 : vector<1x256xf32> to vector<16x256xf32>
    %127 = arith.addf %124, %126 : vector<16x256xf32>
    %cst_50 = arith.constant 0.000000e+00 : f32
    %128 = vector.broadcast %cst_50 : f32 to vector<16x256xf32>
    %129 = arith.maximumf %127, %128 : vector<16x256xf32>
    %130 = arith.truncf %129 : vector<16x256xf32> to vector<16x256xbf16>
    %c0_51 = arith.constant 0 : index
    %c0_52 = arith.constant 0 : index
    %131 = vector.load %arg7[%c0_51, %c0_52] : memref<256x64xbf16, #tpu.memory_space<vmem>>, vector<256x64xbf16>
    %cst_53 = arith.constant dense<0.000000e+00> : vector<16x64xf32>
    %132 = tpu.matmul %130, %131, %cst_53 {dimension_numbers = #tpu.dot_dimension_numbers<[1], [0], [0], [1], [0, 0, 1, 1], [], []>} : vector<16x256xbf16>, vector<256x64xbf16>, vector<16x64xf32> -> vector<16x64xf32>
    %c0_54 = arith.constant 0 : index
    %c0_55 = arith.constant 0 : index
    %133 = vector.load %arg8[%c0_54, %c0_55] : memref<1x64xf32, #tpu.memory_space<vmem>>, vector<1x64xf32>
    %134 = vector.broadcast %133 : vector<1x64xf32> to vector<16x64xf32>
    %135 = arith.addf %132, %134 : vector<16x64xf32>
    %136 = arith.addf %95, %135 : vector<16x64xf32>
    %c0_56 = arith.constant 0 : index
    %c0_57 = arith.constant 0 : index
    %137 = vector.load %arg13[%c0_56, %c0_57] : memref<16x64xf32, #tpu.memory_space<vmem>>, vector<16x64xf32>
    tpu.vector_store %arg13[%c0_56, %c0_57], %136 {strides = array<i32>} : memref<16x64xf32, #tpu.memory_space<vmem>>, vector<16x64xf32>,
    return
  }
  func.func @transform_0(%arg0: i32) -> (i32, i32) {
    %c0_i32 = arith.constant 0 : i32
    %c0_i32_0 = arith.constant 0 : i32
    return %arg0, %c0_i32 : i32, i32
  }
  func.func @transform_1(%arg0: i32) -> (i32, i32) {
    %c0_i32 = arith.constant 0 : i32
    %c0_i32_0 = arith.constant 0 : i32
    %c0_i32_1 = arith.constant 0 : i32
    return %c0_i32, %c0_i32_0 : i32, i32
  }
  func.func @transform_2(%arg0: i32) -> (i32, i32) {
    %c0_i32 = arith.constant 0 : i32
    %c0_i32_0 = arith.constant 0 : i32
    %c0_i32_1 = arith.constant 0 : i32
    return %c0_i32, %c0_i32_0 : i32, i32
  }
  func.func @transform_3(%arg0: i32) -> (i32, i32) {
    %c0_i32 = arith.constant 0 : i32
    %c0_i32_0 = arith.constant 0 : i32
    %c0_i32_1 = arith.constant 0 : i32
    return %c0_i32, %c0_i32_0 : i32, i32
  }
  func.func @transform_4(%arg0: i32) -> (i32, i32) {
    %c0_i32 = arith.constant 0 : i32
    %c0_i32_0 = arith.constant 0 : i32
    %c0_i32_1 = arith.constant 0 : i32
    return %c0_i32, %c0_i32_0 : i32, i32
  }
  func.func @transform_5(%arg0: i32) -> (i32, i32) {
    %c0_i32 = arith.constant 0 : i32
    %c0_i32_0 = arith.constant 0 : i32
    %c0_i32_1 = arith.constant 0 : i32
    return %c0_i32, %c0_i32_0 : i32, i32
  }
  func.func @transform_6(%arg0: i32) -> (i32, i32) {
    %c0_i32 = arith.constant 0 : i32
    %c0_i32_0 = arith.constant 0 : i32
    %c0_i32_1 = arith.constant 0 : i32
    return %c0_i32, %c0_i32_0 : i32, i32
  }
  func.func @transform_7(%arg0: i32) -> (i32, i32) {
    %c0_i32 = arith.constant 0 : i32
    %c0_i32_0 = arith.constant 0 : i32
    %c0_i32_1 = arith.constant 0 : i32
    return %c0_i32, %c0_i32_0 : i32, i32
  }
  func.func @transform_8(%arg0: i32) -> (i32, i32) {
    %c0_i32 = arith.constant 0 : i32
    %c0_i32_0 = arith.constant 0 : i32
    %c0_i32_1 = arith.constant 0 : i32
    return %c0_i32, %c0_i32_0 : i32, i32
  }
  func.func @transform_9(%arg0: i32) -> (i32, i32) {
    %c0_i32 = arith.constant 0 : i32
    %c0_i32_0 = arith.constant 0 : i32
    %c0_i32_1 = arith.constant 0 : i32
    return %c0_i32, %c0_i32_0 : i32, i32
  }
  func.func @transform_10(%arg0: i32) -> (i32, i32) {
    %c0_i32 = arith.constant 0 : i32
    %c0_i32_0 = arith.constant 0 : i32
    %c0_i32_1 = arith.constant 0 : i32
    return %c0_i32, %c0_i32_0 : i32, i32
  }
  func.func @transform_11(%arg0: i32) -> (i32, i32) {
    %c0_i32 = arith.constant 0 : i32
    %c0_i32_0 = arith.constant 0 : i32
    %c0_i32_1 = arith.constant 0 : i32
    return %c0_i32, %c0_i32_0 : i32, i32
  }
  func.func @transform_12(%arg0: i32) -> (i32, i32) {
    %c0_i32 = arith.constant 0 : i32
    %c0_i32_0 = arith.constant 0 : i32
    return %arg0, %c0_i32 : i32, i32
  }
}

</mosaic_0001>

<llo_original>
// kernel: tpu_custom_call.1
$region0: #{tpu_custom_call.1}
  #allocation0 [shape = 'u32[]', space=smem, size = 0x4, offset = 0x4, fixed_abs, tag = 'smem constant byte address 0x4 - core index']
  #allocation1 [shape = 'u32[144,128]{1,0:T(1,128)}', space=vmem, size = 0x12000, scoped, tag = 'internal scratch']
  #allocation2 [shape = 'f32[16,64]{1,0:T(8,128)}', space=vmem, size = 0x2000, scoped, tag = 'scratch operand']
  %s0 = inlined_call_operand.hbm [shape: f32[32,64], index: 0, kind: input, shape index: {}, may-alias: {0,12}]
  %s1 = inlined_call_operand.vmem [shape: bf16[64,192], index: 1, kind: input, shape index: {}]
  %s2 = inlined_call_operand.vmem [shape: bf16[64,64], index: 2, kind: input, shape index: {}]
  %s3 = inlined_call_operand.vmem [shape: f32[1,64], index: 3, kind: input, shape index: {}]
  %s4 = inlined_call_operand.vmem [shape: bf16[64,256], index: 4, kind: input, shape index: {}]
  %s5 = inlined_call_operand.vmem [shape: f32[1,256], index: 5, kind: input, shape index: {}]
  %s6 = inlined_call_operand.vmem [shape: bf16[256,64], index: 6, kind: input, shape index: {}]
  %s7 = inlined_call_operand.vmem [shape: f32[1,64], index: 7, kind: input, shape index: {}]
  %s8 = inlined_call_operand.vmem [shape: f32[1,64], index: 8, kind: input, shape index: {}]
  %s9 = inlined_call_operand.vmem [shape: f32[1,64], index: 9, kind: input, shape index: {}]
  %s10 = inlined_call_operand.vmem [shape: f32[1,64], index: 10, kind: input, shape index: {}]
  %s11 = inlined_call_operand.vmem [shape: f32[1,64], index: 11, kind: input, shape index: {}]
  %s12 = inlined_call_operand.hbm [shape: f32[32,64], index: 12, kind: output, shape index: {}, may-alias: {0,12}]
  %s13 = sld [smem:[#allocation0]]
  $region85: #{tpu_custom_call.1} parent=0
    _
  %s15 = ssub.s32 1, %s13
  %s16 = scalar_select 0, %s15, %s13
  $region1: #{tpu_custom_call.1} parent=0
    #allocation3 [shape = 'u8[16384]{0}', space=vmem, size = 0x4000, scoped, tag = 'input window, operand 0']
    #allocation4 [shape = 's32[2]{0}', space=sflag, size = 0x8, scoped, tag = 'scoped memory for tpu_custom_call.1']
    #allocation5 [shape = 's32[2]{0}', space=sflag, size = 0x8, scoped, tag = 'scoped memory for tpu_custom_call.1']
    #allocation6 [shape = 'u8[16384]{0}', space=vmem, size = 0x4000, scoped, tag = 'output window, operand 0']
    %17 = vsyncpa [#allocation4], 0
    %s18 = scalar_lea.sflag [#allocation4], 1
    %19 = vsyncpa %s18, 0
    %20 = vsyncpa [#allocation5], 0
    %s21 = scalar_lea.sflag [#allocation5], 1
    %22 = vsyncpa %s21, 0
    loop: start=0, step=1, limit=4
    $region2: #{tpu_custom_call.1} parent=1 // loop_pre_header
      _
    $region3: #{tpu_custom_call.1} parent=1 // loop_header
      %s24 = sphi 0, %s28
      %p25 = scmp.ge.s32.totalorder %s24, 4
      %s34 = sphi 0, %s36
      %s37 = sphi 0, %s34
      %s38 = sphi 0, %s37
      %s54 = sphi 0, %s38
      %s58 = sphi 0, %s58
      %s60 = sphi 0, %s58
      %s61 = sphi 0, %s60
      %s75 = sphi 0, %s61
      %s79 = sphi 0, %s79
      %s81 = sphi 0, %s79
      %s82 = sphi 0, %s81
      %s96 = sphi 0, %s82
      %s100 = sphi 0, %s100
      %s102 = sphi 0, %s100
      %s103 = sphi 0, %s102
      %s117 = sphi 0, %s103
      %s121 = sphi 0, %s121
      %s123 = sphi 0, %s121
      %s124 = sphi 0, %s123
      %s138 = sphi 0, %s124
      %s142 = sphi 0, %s142
      %s144 = sphi 0, %s142
      %s145 = sphi 0, %s144
      %s159 = sphi 0, %s145
      %s163 = sphi 0, %s163
      %s165 = sphi 0, %s163
      %s166 = sphi 0, %s165
      %s180 = sphi 0, %s166
      %s184 = sphi 0, %s184
      %s186 = sphi 0, %s184
      %s187 = sphi 0, %s186
      %s201 = sphi 0, %s187
      %s205 = sphi 0, %s205
      %s207 = sphi 0, %s205
      %s208 = sphi 0, %s207
      %s222 = sphi 0, %s208
      %s226 = sphi 0, %s226
      %s228 = sphi 0, %s226
      %s229 = sphi 0, %s228
      %s243 = sphi 0, %s229
      %s247 = sphi 0, %s247
      %s249 = sphi 0, %s247
      %s250 = sphi 0, %s249
      %s264 = sphi 0, %s250
      %s268 = sphi 0, %s268
      %s270 = sphi 0, %s268
      %s271 = sphi 0, %s270
      %s285 = sphi 0, %s271
      %s291 = sphi 0, %s293
      %s294 = sphi 0, %s291
      %s295 = sphi 0, %s294
      %s311 = sphi 0, %s295
    $region4: #{tpu_custom_call.1} parent=1 // loop_header_branch
      %27 = sbr.rel (%p25) target = $region8
    $region5: #{tpu_custom_call.1} parent=1 // loop_body
      %s29 = ssub.s32 %s24, 1
      %s30 = ssub.s32 %s24, 2
      %s31 = sadd.s32 %s24, 1
      %s32 = ssub.s32 %s24, %s31
      %p33 = scmp.eq.s32.totalorder %s32, 0
      %s35 = sadd.s32 %s34, 1
      %s36 = scalar_select %p33, %s34, %s35
      %p39 = pneg %p33
      %p40 = scmp.eq.s32.totalorder %s24, 1
      %p41 = por %p39, %p40
      %p42 = scmp.ne.s32.totalorder %s34, %s37
      %p43 = scmp.eq.s32.totalorder %s24, 0
      %p44 = por %p42, %p43
      %p45 = scmp.ne.s32.totalorder %s34, %s37
      %p46 = scmp.eq.s32.totalorder %s29, 1
      %p47 = por %p45, %p46
      %p48 = scmp.ne.s32.totalorder %s37, %s38
      %p49 = scmp.eq.s32.totalorder %s29, 0
      %p50 = por %p48, %p49
      %p51 = scmp.ne.s32.totalorder %s37, %s38
      %p52 = scmp.eq.s32.totalorder %s30, 1
      %p53 = por %p51, %p52
      %p55 = scmp.ne.s32.totalorder %s38, %s54
      %p56 = scmp.eq.s32.totalorder %s30, 0
      %p57 = por %p55, %p56
      %s59 = sadd.s32 %s58, 1
      %p62 = scmp.eq.s32.totalorder %s24, 1
      %p63 = scmp.ne.s32.totalorder %s58, %s60
      %p64 = scmp.eq.s32.totalorder %s24, 0
      %p65 = por %p63, %p64
      %p66 = scmp.ne.s32.totalorder %s58, %s60
      %p67 = scmp.eq.s32.totalorder %s29, 1
      %p68 = por %p66, %p67
      %p69 = scmp.ne.s32.totalorder %s60, %s61
      %p70 = scmp.eq.s32.totalorder %s29, 0
      %p71 = por %p69, %p70
      %p72 = scmp.ne.s32.totalorder %s60, %s61
      %p73 = scmp.eq.s32.totalorder %s30, 1
      %p74 = por %p72, %p73
      %p76 = scmp.ne.s32.totalorder %s61, %s75
      %p77 = scmp.eq.s32.totalorder %s30, 0
      %p78 = por %p76, %p77
      %s80 = sadd.s32 %s79, 1
      %p83 = scmp.eq.s32.totalorder %s24, 1
      %p84 = scmp.ne.s32.totalorder %s79, %s81
      %p85 = scmp.eq.s32.totalorder %s24, 0
      %p86 = por %p84, %p85
      %p87 = scmp.ne.s32.totalorder %s79, %s81
      %p88 = scmp.eq.s32.totalorder %s29, 1
      %p89 = por %p87, %p88
      %p90 = scmp.ne.s32.totalorder %s81, %s82
      %p91 = scmp.eq.s32.totalorder %s29, 0
      %p92 = por %p90, %p91
      %p93 = scmp.ne.s32.totalorder %s81, %s82
      %p94 = scmp.eq.s32.totalorder %s30, 1
      %p95 = por %p93, %p94
      %p97 = scmp.ne.s32.totalorder %s82, %s96
      %p98 = scmp.eq.s32.totalorder %s30, 0
      %p99 = por %p97, %p98
      %s101 = sadd.s32 %s100, 1
      %p104 = scmp.eq.s32.totalorder %s24, 1
      %p105 = scmp.ne.s32.totalorder %s100, %s102
      %p106 = scmp.eq.s32.totalorder %s24, 0
      %p107 = por %p105, %p106
      %p108 = scmp.ne.s32.totalorder %s100, %s102
      %p109 = scmp.eq.s32.totalorder %s29, 1
      %p110 = por %p108, %p109
      %p111 = scmp.ne.s32.totalorder %s102, %s103
      %p112 = scmp.eq.s32.totalorder %s29, 0
      %p113 = por %p111, %p112
      %p114 = scmp.ne.s32.totalorder %s102, %s103
      %p115 = scmp.eq.s32.totalorder %s30, 1
      %p116 = por %p114, %p115
      %p118 = scmp.ne.s32.totalorder %s103, %s117
      %p119 = scmp.eq.s32.totalorder %s30, 0
      %p120 = por %p118, %p119
      %s122 = sadd.s32 %s121, 1
      %p125 = scmp.eq.s32.totalorder %s24, 1
      %p126 = scmp.ne.s32.totalorder %s121, %s123
      %p127 = scmp.eq.s32.totalorder %s24, 0
      %p128 = por %p126, %p127
      %p129 = scmp.ne.s32.totalorder %s121, %s123
      %p130 = scmp.eq.s32.totalorder %s29, 1
      %p131 = por %p129, %p130
      %p132 = scmp.ne.s32.totalorder %s123, %s124
      %p133 = scmp.eq.s32.totalorder %s29, 0
      %p134 = por %p132, %p133
      %p135 = scmp.ne.s32.totalorder %s123, %s124
      %p136 = scmp.eq.s32.totalorder %s30, 1
      %p137 = por %p135, %p136
      %p139 = scmp.ne.s32.totalorder %s124, %s138
      %p140 = scmp.eq.s32.totalorder %s30, 0
      %p141 = por %p139, %p140
      %s143 = sadd.s32 %s142, 1
      %p146 = scmp.eq.s32.totalorder %s24, 1
      %p147 = scmp.ne.s32.totalorder %s142, %s144
      %p148 = scmp.eq.s32.totalorder %s24, 0
      %p149 = por %p147, %p148
      %p150 = scmp.ne.s32.totalorder %s142, %s144
      %p151 = scmp.eq.s32.totalorder %s29, 1
      %p152 = por %p150, %p151
      %p153 = scmp.ne.s32.totalorder %s144, %s145
      %p154 = scmp.eq.s32.totalorder %s29, 0
      %p155 = por %p153, %p154
      %p156 = scmp.ne.s32.totalorder %s144, %s145
      %p157 = scmp.eq.s32.totalorder %s30, 1
      %p158 = por %p156, %p157
      %p160 = scmp.ne.s32.totalorder %s145, %s159
      %p161 = scmp.eq.s32.totalorder %s30, 0
      %p162 = por %p160, %p161
      %s164 = sadd.s32 %s163, 1
      %p167 = scmp.eq.s32.totalorder %s24, 1
      %p168 = scmp.ne.s32.totalorder %s163, %s165
      %p169 = scmp.eq.s32.totalorder %s24, 0
      %p170 = por %p168, %p169
      %p171 = scmp.ne.s32.totalorder %s163, %s165
      %p172 = scmp.eq.s32.totalorder %s29, 1
      %p173 = por %p171, %p172
      %p174 = scmp.ne.s32.totalorder %s165, %s166
      %p175 = scmp.eq.s32.totalorder %s29, 0
      %p176 = por %p174, %p175
      %p177 = scmp.ne.s32.totalorder %s165, %s166
      %p178 = scmp.eq.s32.totalorder %s30, 1
      %p179 = por %p177, %p178
      %p181 = scmp.ne.s32.totalorder %s166, %s180
      %p182 = scmp.eq.s32.totalorder %s30, 0
      %p183 = por %p181, %p182
      %s185 = sadd.s32 %s184, 1
      %p188 = scmp.eq.s32.totalorder %s24, 1
      %p189 = scmp.ne.s32.totalorder %s184, %s186
      %p190 = scmp.eq.s32.totalorder %s24, 0
      %p191 = por %p189, %p190
      %p192 = scmp.ne.s32.totalorder %s184, %s186
      %p193 = scmp.eq.s32.totalorder %s29, 1
      %p194 = por %p192, %p193
      %p195 = scmp.ne.s32.totalorder %s186, %s187
      %p196 = scmp.eq.s32.totalorder %s29, 0
      %p197 = por %p195, %p196
      %p198 = scmp.ne.s32.totalorder %s186, %s187
      %p199 = scmp.eq.s32.totalorder %s30, 1
      %p200 = por %p198, %p199
      %p202 = scmp.ne.s32.totalorder %s187, %s201
      %p203 = scmp.eq.s32.totalorder %s30, 0
      %p204 = por %p202, %p203
      %s206 = sadd.s32 %s205, 1
      %p209 = scmp.eq.s32.totalorder %s24, 1
      %p210 = scmp.ne.s32.totalorder %s205, %s207
      %p211 = scmp.eq.s32.totalorder %s24, 0
      %p212 = por %p210, %p211
      %p213 = scmp.ne.s32.totalorder %s205, %s207
      %p214 = scmp.eq.s32.totalorder %s29, 1
      %p215 = por %p213, %p214
      %p216 = scmp.ne.s32.totalorder %s207, %s208
      %p217 = scmp.eq.s32.totalorder %s29, 0
      %p218 = por %p216, %p217
      %p219 = scmp.ne.s32.totalorder %s207, %s208
      %p220 = scmp.eq.s32.totalorder %s30, 1
      %p221 = por %p219, %p220
      %p223 = scmp.ne.s32.totalorder %s208, %s222
      %p224 = scmp.eq.s32.totalorder %s30, 0
      %p225 = por %p223, %p224
      %s227 = sadd.s32 %s226, 1
      %p230 = scmp.eq.s32.totalorder %s24, 1
      %p231 = scmp.ne.s32.totalorder %s226, %s228
      %p232 = scmp.eq.s32.totalorder %s24, 0
      %p233 = por %p231, %p232
      %p234 = scmp.ne.s32.totalorder %s226, %s228
      %p235 = scmp.eq.s32.totalorder %s29, 1
      %p236 = por %p234, %p235
      %p237 = scmp.ne.s32.totalorder %s228, %s229
      %p238 = scmp.eq.s32.totalorder %s29, 0
      %p239 = por %p237, %p238
      %p240 = scmp.ne.s32.totalorder %s228, %s229
      %p241 = scmp.eq.s32.totalorder %s30, 1
      %p242 = por %p240, %p241
      %p244 = scmp.ne.s32.totalorder %s229, %s243
      %p245 = scmp.eq.s32.totalorder %s30, 0
      %p246 = por %p244, %p245
      %s248 = sadd.s32 %s247, 1
      %p251 = scmp.eq.s32.totalorder %s24, 1
      %p252 = scmp.ne.s32.totalorder %s247, %s249
      %p253 = scmp.eq.s32.totalorder %s24, 0
      %p254 = por %p252, %p253
      %p255 = scmp.ne.s32.totalorder %s247, %s249
      %p256 = scmp.eq.s32.totalorder %s29, 1
      %p257 = por %p255, %p256
      %p258 = scmp.ne.s32.totalorder %s249, %s250
      %p259 = scmp.eq.s32.totalorder %s29, 0
      %p260 = por %p258, %p259
      %p261 = scmp.ne.s32.totalorder %s249, %s250
      %p262 = scmp.eq.s32.totalorder %s30, 1
      %p263 = por %p261, %p262
      %p265 = scmp.ne.s32.totalorder %s250, %s264
      %p266 = scmp.eq.s32.totalorder %s30, 0
      %p267 = por %p265, %p266
      %s269 = sadd.s32 %s268, 1
      %p272 = scmp.eq.s32.totalorder %s24, 1
      %p273 = scmp.ne.s32.totalorder %s268, %s270
      %p274 = scmp.eq.s32.totalorder %s24, 0
      %p275 = por %p273, %p274
      %p276 = scmp.ne.s32.totalorder %s268, %s270
      %p277 = scmp.eq.s32.totalorder %s29, 1
      %p278 = por %p276, %p277
      %p279 = scmp.ne.s32.totalorder %s270, %s271
      %p280 = scmp.eq.s32.totalorder %s29, 0
      %p281 = por %p279, %p280
      %p282 = scmp.ne.s32.totalorder %s270, %s271
      %p283 = scmp.eq.s32.totalorder %s30, 1
      %p284 = por %p282, %p283
      %p286 = scmp.ne.s32.totalorder %s271, %s285
      %p287 = scmp.eq.s32.totalorder %s30, 0
      %p288 = por %p286, %p287
      %s289 = ssub.s32 %s24, %s31
      %p290 = scmp.eq.s32.totalorder %s289, 0
      %s292 = sadd.s32 %s291, 1
      %s293 = scalar_select %p290, %s291, %s292
      %p296 = pneg %p290
      %p297 = scmp.eq.s32.totalorder %s24, 1
      %p298 = por %p296, %p297
      %p299 = scmp.ne.s32.totalorder %s291, %s294
      %p300 = scmp.eq.s32.totalorder %s24, 0
      %p301 = por %p299, %p300
      %p302 = scmp.ne.s32.totalorder %s291, %s294
      %p303 = scmp.eq.s32.totalorder %s29, 1
      %p304 = por %p302, %p303
      %p305 = scmp.ne.s32.totalorder %s294, %s295
      %p306 = scmp.eq.s32.totalorder %s29, 0
      %p307 = por %p305, %p306
      %p308 = scmp.ne.s32.totalorder %s294, %s295
      %p309 = scmp.eq.s32.totalorder %s30, 1
      %p310 = por %p308, %p309
      %p312 = scmp.ne.s32.totalorder %s295, %s311
      %p313 = scmp.eq.s32.totalorder %s30, 0
      %p314 = por %p312, %p313
      %p315 = scmp.le.s32.totalorder 1, %s24
      %p316 = scmp.lt.s32.totalorder %s24, 3
      %p317 = pnand %p315, %p316
      %p318 = pneg %p317
      // Predicated region
      $region9: #{tpu_custom_call.1} parent=5 // pred_check
        _
      $region10: #{tpu_custom_call.1} parent=5 // pred_check_branch
        %320 = sbr.rel (%p317) target = $region12
      $region11: #{tpu_custom_call.1} parent=5 // pred_region
        %s321 = ssub.s32 %s24, 1
        // Predicated region
        $region13: #{tpu_custom_call.1} parent=11 // pred_check
          %p322 = pneg %p71
        $region14: #{tpu_custom_call.1} parent=11 // pred_check_branch
          %324 = sbr.rel (%p322) target = $region16
        $region15: #{tpu_custom_call.1} parent=11 // pred_region
          _
        $region16: #{tpu_custom_call.1} parent=11 // pred_fallthru
          _
        // Predicated region
        $region17: #{tpu_custom_call.1} parent=11 // pred_check
          %p325 = pneg %p92
        $region18: #{tpu_custom_call.1} parent=11 // pred_check_branch
          %327 = sbr.rel (%p325) target = $region20
        $region19: #{tpu_custom_call.1} parent=11 // pred_region
          _
        $region20: #{tpu_custom_call.1} parent=11 // pred_fallthru
          _
        // Predicated region
        $region21: #{tpu_custom_call.1} parent=11 // pred_check
          %p328 = pneg %p113
        $region22: #{tpu_custom_call.1} parent=11 // pred_check_branch
          %330 = sbr.rel (%p328) target = $region24
        $region23: #{tpu_custom_call.1} parent=11 // pred_region
          _
        $region24: #{tpu_custom_call.1} parent=11 // pred_fallthru
          _
        // Predicated region
        $region25: #{tpu_custom_call.1} parent=11 // pred_check
          %p331 = pneg %p134
        $region26: #{tpu_custom_call.1} parent=11 // pred_check_branch
          %333 = sbr.rel (%p331) target = $region28
        $region27: #{tpu_custom_call.1} parent=11 // pred_region
          _
        $region28: #{tpu_custom_call.1} parent=11 // pred_fallthru
          _
        // Predicated region
        $region29: #{tpu_custom_call.1} parent=11 // pred_check
          %p334 = pneg %p155
        $region30: #{tpu_custom_call.1} parent=11 // pred_check_branch
          %336 = sbr.rel (%p334) target = $region32
        $region31: #{tpu_custom_call.1} parent=11 // pred_region
          _
        $region32: #{tpu_custom_call.1} parent=11 // pred_fallthru
          _
        // Predicated region
        $region33: #{tpu_custom_call.1} parent=11 // pred_check
          %p337 = pneg %p176
        $region34: #{tpu_custom_call.1} parent=11 // pred_check_branch
          %339 = sbr.rel (%p337) target = $region36
        $region35: #{tpu_custom_call.1} parent=11 // pred_region
          _
        $region36: #{tpu_custom_call.1} parent=11 // pred_fallthru
          _
        // Predicated region
        $region37: #{tpu_custom_call.1} parent=11 // pred_check
          %p340 = pneg %p197
        $region38: #{tpu_custom_call.1} parent=11 // pred_check_branch
          %342 = sbr.rel (%p340) target = $region40
        $region39: #{tpu_custom_call.1} parent=11 // pred_region
          _
        $region40: #{tpu_custom_call.1} parent=11 // pred_fallthru
          _
        // Predicated region
        $region41: #{tpu_custom_call.1} parent=11 // pred_check
          %p343 = pneg %p218
        $region42: #{tpu_custom_call.1} parent=11 // pred_check_branch
          %345 = sbr.rel (%p343) target = $region44
        $region43: #{tpu_custom_call.1} parent=11 // pred_region
          _
        $region44: #{tpu_custom_call.1} parent=11 // pred_fallthru
          _
        // Predicated region
        $region45: #{tpu_custom_call.1} parent=11 // pred_check
          %p346 = pneg %p239
        $region46: #{tpu_custom_call.1} parent=11 // pred_check_branch
          %348 = sbr.rel (%p346) target = $region48
        $region47: #{tpu_custom_call.1} parent=11 // pred_region
          _
        $region48: #{tpu_custom_call.1} parent=11 // pred_fallthru
          _
        // Predicated region
        $region49: #{tpu_custom_call.1} parent=11 // pred_check
          %p349 = pneg %p260
        $region50: #{tpu_custom_call.1} parent=11 // pred_check_branch
          %351 = sbr.rel (%p349) target = $region52
        $region51: #{tpu_custom_call.1} parent=11 // pred_region
          _
        $region52: #{tpu_custom_call.1} parent=11 // pred_fallthru
          _
        // Predicated region
        $region53: #{tpu_custom_call.1} parent=11 // pred_check
          %p352 = pneg %p281
        $region54: #{tpu_custom_call.1} parent=11 // pred_check_branch
          %354 = sbr.rel (%p352) target = $region56
        $region55: #{tpu_custom_call.1} parent=11 // pred_region
          _
        $region56: #{tpu_custom_call.1} parent=11 // pred_fallthru
          _
      $region12: #{tpu_custom_call.1} parent=5 // pred_fallthru
        _
      %p355 = scmp.lt.s32.totalorder %s24, 2
      // Predicated region
      $region57: #{tpu_custom_call.1} parent=5 // pred_check
        %p356 = pneg %p355
      $region58: #{tpu_custom_call.1} parent=5 // pred_check_branch
        %358 = sbr.rel (%p356) target = $region60
      $region59: #{tpu_custom_call.1} parent=5 // pred_region
        // Predicated region
        $region61: #{tpu_custom_call.1} parent=59 // pred_check
          %p359 = pneg %p44
        $region62: #{tpu_custom_call.1} parent=59 // pred_check_branch
          %361 = sbr.rel (%p359) target = $region64
        $region63: #{tpu_custom_call.1} parent=59 // pred_region
          %s362 = sand.u32 %s34, 1
          %s363 = scalar_lea.sflag [#allocation4], %s362
          %s364 = sand.u32 %s34, 1
          %s365 = smul.addr %s364, 16
          %s366 = scalar_lea.vmem [#allocation3], %s365
          %s367 = smul.u32 2, %s24
          %s369 = ssub.s32 256, 256
          %370 = vsyncadd %s363, %s369
          %s371 = smul.addr %s367, 128
          %s372 = scalar_lea.hbm %s0, %s371
          %s373 = sshll.u32 %s366, 4
          %s374 = int_to_ptr.vmem [resolvable:$true] %s373
          %379 = dma.hbm_to_vmem [thread:$0]  %s372, 256, %s374, %s363, 128, 128, 8
        $region64: #{tpu_custom_call.1} parent=59 // pred_fallthru
          _
      $region60: #{tpu_custom_call.1} parent=5 // pred_fallthru
        _
      %p380 = scmp.le.s32.totalorder 1, %s24
      %p381 = scmp.lt.s32.totalorder %s24, 3
      %p382 = pnand %p380, %p381
      %p383 = pneg %p382
      // Predicated region
      $region65: #{tpu_custom_call.1} parent=5 // pred_check
        _
      $region66: #{tpu_custom_call.1} parent=5 // pred_check_branch
        %385 = sbr.rel (%p382) target = $region68
      $region67: #{tpu_custom_call.1} parent=5 // pred_region
        %s386 = ssub.s32 %s24, 1
        %s387 = sand.u32 %s37, 1
        %s388 = scalar_lea.sflag [#allocation4], %s387
        %s389 = sand.u32 %s37, 1
        %s390 = smul.addr %s389, 16
        %s391 = scalar_lea.vmem [#allocation3], %s390
        // Predicated region
        $region69: #{tpu_custom_call.1} parent=67 // pred_check
          %p392 = pneg %p50
        $region70: #{tpu_custom_call.1} parent=67 // pred_check_branch
          %394 = sbr.rel (%p392) target = $region72
        $region71: #{tpu_custom_call.1} parent=67 // pred_region
          %395 = dma.done %s388, 256
        $region72: #{tpu_custom_call.1} parent=67 // pred_fallthru
          _
        %s396 = sand.u32 %s37, 1
        %s397 = scalar_lea.sflag [#allocation4], %s396
        %s398 = sand.u32 %s37, 1
        %s399 = smul.addr %s398, 16
        %s400 = scalar_lea.vmem [#allocation3], %s399
        %p401 = pneg %p50
        %p402 = pneg %p47
        %p403 = pneg %p71
        %p404 = pneg %p68
        %p405 = pneg %p92
        %p406 = pneg %p89
        %p407 = pneg %p113
        %p408 = pneg %p110
        %p409 = pneg %p134
        %p410 = pneg %p131
        %p411 = pneg %p155
        %p412 = pneg %p152
        %p413 = pneg %p176
        %p414 = pneg %p173
        %p415 = pneg %p197
        %p416 = pneg %p194
        %p417 = pneg %p218
        %p418 = pneg %p215
        %p419 = pneg %p239
        %p420 = pneg %p236
        %p421 = pneg %p260
        %p422 = pneg %p257
        %p423 = pneg %p281
        %p424 = pneg %p278
        %p425 = pneg %p307
        %p426 = pneg %p304
        %s427 = sand.u32 %s294, 1
        %s428 = scalar_lea.sflag [#allocation5], %s427
        %s429 = sand.u32 %s294, 1
        %s430 = smul.addr %s429, 16
        %s431 = scalar_lea.vmem [#allocation6], %s430
        %s432 = smul.u32 2, %s29
        %s433 = smul.u32 2, %s29
        %v435 = vld [vmem:[%s391] sm:$0xff]
        %v436 = vld [vmem:[%s391 + $0x8] sm:$0xff]
        %v437 = vld [vmem:[%s8] sm:$0x1]
        %v438 = vld [vmem:[%s9] sm:$0x1]
        %vm439 = vcmask 523264
        %v440 = vsel %vm439, %v435, 0.0
        %441 = vadd.xlane.f32.xlu0 %v440
        %v442 = vpop.xlane.xlu0 %441
        %v443 = vsel %vm439, %v436, 0.0
        %444 = vadd.xlane.f32.xlu0 %v443
        %v445 = vpop.xlane.xlu0 %444
        %v446 = vrcp.pop 64.0
        %v447 = vmul.f32 %v442, %v446
        %v448 = vmul.f32 %v445, %v446
        %v449 = vsub.f32 %v435, %v447
        %v450 = vsub.f32 %v436, %v448
        %v451 = vmul.f32 %v449, %v449
        %v452 = vmul.f32 %v450, %v450
        %v453 = vsel %vm439, %v451, 0.0
        %454 = vadd.xlane.f32.xlu0 %v453
        %v455 = vpop.xlane.xlu0 %454
        %v456 = vsel %vm439, %v452, 0.0
        %457 = vadd.xlane.f32.xlu0 %v456
        %v458 = vpop.xlane.xlu0 %457
        %v459 = vmul.f32 %v455, %v446
        %v460 = vmul.f32 %v458, %v446
        %v461 = vadd.f32 %v459, 1e-05
        %v462 = vadd.f32 %v460, 1e-05
        %v463 = vrsqrt.pop %v461
        %v464 = vrsqrt.pop %v462
        %v465 = vmul.f32 %v449, %v463
        %v466 = vmul.f32 %v450, %v464
        %v468 = vlaneseq
        %v469 = vshrl.u32 %v468, 7
        %v470 = vsub.s32 0, %v469
        %v471 = vrot.slane %v437, %v470
        %v473 = vmul.f32 %v465, %v471
        %v474 = vmul.f32 %v466, %v471
        %v476 = vlaneseq
        %v477 = vshrl.u32 %v476, 7
        %v478 = vsub.s32 0, %v477
        %v479 = vrot.slane %v438, %v478
        %v481 = vadd.f32 %v473, %v479
        %v482 = vadd.f32 %v474, %v479
        %v483 = vpack.c.bf16 %v482, %v481
        %v484 = vld [vmem:[%s1] sm:$0xff]
        %v485 = vld [vmem:[%s1 + $0x8] sm:$0xff]
        %v486 = vld [vmem:[%s1 + $0x10] sm:$0xff]
        %v487 = vld [vmem:[%s1 + $0x18] sm:$0xff]
        %v488 = vld [vmem:[%s1 + $0x20] sm:$0xff]
        %v489 = vld [vmem:[%s1 + $0x28] sm:$0xff]
        %v490 = vld [vmem:[%s1 + $0x30] sm:$0xff]
        %v491 = vld [vmem:[%s1 + $0x38] sm:$0xff]
        %v500 = vunpack.c.l.b16 %v484
        %v501 = vunpack.c.h.b16 %v484
        %v502 = vunpack.c.l.b16 %v485
        %v503 = vunpack.c.h.b16 %v485
        %v504 = vunpack.c.l.b16 %v486
        %v505 = vunpack.c.h.b16 %v486
        %v506 = vunpack.c.l.b16 %v487
        %v507 = vunpack.c.h.b16 %v487
        %v508 = vunpack.c.l.b16 %v488
        %v509 = vunpack.c.h.b16 %v488
        %v510 = vunpack.c.l.b16 %v489
        %v511 = vunpack.c.h.b16 %v489
        %v512 = vunpack.c.l.b16 %v490
        %v513 = vunpack.c.h.b16 %v490
        %v514 = vunpack.c.l.b16 %v491
        %v515 = vunpack.c.h.b16 %v491
        %v516 = vpack.c.b16 %v502, %v500
        %v517 = vpack.c.b16 %v503, %v501
        %v518 = vpack.c.b16 %v506, %v504
        %v519 = vpack.c.b16 %v507, %v505
        %v520 = vpack.c.b16 %v510, %v508
        %v521 = vpack.c.b16 %v511, %v509
        %v522 = vpack.c.b16 %v514, %v512
        %v523 = vpack.c.b16 %v515, %v513
        %v533 = vsel %vm439, %v483, 0
        %535 = vmatprep.subr.bf16.mxu0 %v517
        %536 = vmatpush1.bf16.msra.mxu0 %v516
        %537 = vmatprep.subr.bf16.mxu0 %v519
        %538 = vmatpush1.bf16.msra.mxu0 %v518
        %539 = vmatprep.subr.bf16.mxu0 %v521
        %540 = vmatpush1.bf16.msra.mxu0 %v520
        %541 = vmatprep.subr.bf16.mxu0 %v523
        %542 = vmatpush1.bf16.msra.mxu0 %v522
        %543 = vmatprep.subr.bf16.mxu0 0
        %544 = vmatpush1.bf16.msra.mxu0 0
        %545 = vmatprep.subr.bf16.mxu0 0
        %546 = vmatpush1.bf16.msra.mxu0 0
        %547 = vmatprep.subr.bf16.mxu0 0
        %548 = vmatpush1.bf16.msra.mxu0 0
        %549 = vmatprep.subr.bf16.mxu0 0
        %550 = vmatpush1.bf16.msra.mxu0 0
        %551 = vmatprep.subr.bf16.mxu0 0
        %552 = vmatpush1.bf16.msra.mxu0 0
        %553 = vmatprep.subr.bf16.mxu0 0
        %554 = vmatpush1.bf16.msra.mxu0 0
        %555 = vmatprep.subr.bf16.mxu0 0
        %556 = vmatpush1.bf16.msra.mxu0 0
        %557 = vmatprep.subr.bf16.mxu0 0
        %558 = vmatpush1.bf16.msra.mxu0 0
        %559 = vmatprep.subr.bf16.mxu0 0
        %560 = vmatpush1.bf16.msra.mxu0 0
        %561 = vmatprep.subr.bf16.mxu0 0
        %562 = vmatpush1.bf16.msra.mxu0 0
        %563 = vmatprep.subr.bf16.mxu0 0
        %564 = vmatpush1.bf16.msra.mxu0 0
        %565 = vmatprep.subr.bf16.mxu0 0
        %566 = vmatpush1.bf16.msra.mxu0 0
        %567 = vmatprep.mubr.bf16.mxu0 0
        %568 = vmatmul.mubr.bf16.gmra.mrb[0].mxu0 %v533
        %v569 = vpop.f32.mrb[0].mxu0
        %v570 = vadd.f32 0.0, %v569
        %v571 = vpop.f32.mrb[0].mxu0
        %v572 = vadd.f32 0.0, %v571
        %v573 = vpop.f32.mrb[0].mxu0
        %v574 = vadd.f32 0.0, %v573
        %v575 = vpop.f32.mrb[0].mxu0
        %v576 = vadd.f32 0.0, %v575
        %577 = vdwg.mxu0
        %v578 = vpack.c.bf16 %v574, %v570
        %v579 = vpack.c.bf16 %v576, %v572
        %581 = vrot.lane.b32.xlu0 %v578, 64
        %v582 = vpop.permute.xlu0 %581
        %vm583 = vcmask 130048
        %v585 = vsel %vm583, %v578, 0
        %v588 = vsel %vm583, %v582, 0
        %590 = vmatprep.subr.bf16.mxu0 0
        %591 = vmatpush1.bf16.xpose.msra.mxu0 %v588
        %592 = vmatprep.subr.bf16.mxu0 0
        %593 = vmatpush1.bf16.xpose.msra.mxu0 0
        %594 = vmatprep.subr.bf16.mxu0 0
        %595 = vmatpush1.bf16.xpose.msra.mxu0 0
        %596 = vmatprep.subr.bf16.mxu0 0
        %597 = vmatpush1.bf16.xpose.msra.mxu0 0
        %598 = vmatprep.subr.bf16.mxu0 0
        %599 = vmatpush1.bf16.xpose.msra.mxu0 0
        %600 = vmatprep.subr.bf16.mxu0 0
        %601 = vmatpush1.bf16.xpose.msra.mxu0 0
        %602 = vmatprep.subr.bf16.mxu0 0
        %603 = vmatpush1.bf16.xpose.msra.mxu0 0
        %604 = vmatprep.subr.bf16.mxu0 0
        %605 = vmatpush1.bf16.xpose.msra.mxu0 0
        %606 = vmatprep.subr.bf16.mxu0 0
        %607 = vmatpush1.bf16.xpose.msra.mxu0 0
        %608 = vmatprep.subr.bf16.mxu0 0
        %609 = vmatpush1.bf16.xpose.msra.mxu0 0
        %610 = vmatprep.subr.bf16.mxu0 0
        %611 = vmatpush1.bf16.xpose.msra.mxu0 0
        %612 = vmatprep.subr.bf16.mxu0 0
        %613 = vmatpush1.bf16.xpose.msra.mxu0 0
        %614 = vmatprep.subr.bf16.mxu0 0
        %615 = vmatpush1.bf16.xpose.msra.mxu0 0
        %616 = vmatprep.subr.bf16.mxu0 0
        %617 = vmatpush1.bf16.xpose.msra.mxu0 0
        %618 = vmatprep.subr.bf16.mxu0 0
        %619 = vmatpush1.bf16.xpose.msra.mxu0 0
        %620 = vmatprep.subr.bf16.mxu0 0
        %621 = vmatpush1.bf16.xpose.msra.mxu0 0
        %622 = vmatprep.mubr.bf16.mxu0 0
        %623 = vmatmul.mubr.bf16.gmra.mrb[0].mxu0 %v585
        %v624 = vpop.f32.mrb[0].mxu0
        %v625 = vadd.f32 0.0, %v624
        %v626 = vpop.f32.mrb[0].mxu0
        %v627 = vpop.f32.mrb[0].mxu0
        %v628 = vadd.f32 0.0, %v627
        %v629 = vpop.f32.mrb[0].mxu0
        %630 = vdwg.mxu0
        %631 = vrot.lane.b32.xlu0 %v578, 112
        %v632 = vpop.permute.xlu0 %631
        %633 = vrot.lane.b32.xlu0 %v578, 48
        %v634 = vpop.permute.xlu0 %633
        %v636 = vsel %vm583, %v632, 0
        %v639 = vsel %vm583, %v634, 0
        %641 = vmatprep.subr.bf16.mxu0 0
        %642 = vmatpush1.bf16.xpose.msra.mxu0 %v639
        %643 = vmatprep.subr.bf16.mxu0 0
        %644 = vmatpush1.bf16.xpose.msra.mxu0 0
        %645 = vmatprep.subr.bf16.mxu0 0
        %646 = vmatpush1.bf16.xpose.msra.mxu0 0
        %647 = vmatprep.subr.bf16.mxu0 0
        %648 = vmatpush1.bf16.xpose.msra.mxu0 0
        %649 = vmatprep.subr.bf16.mxu0 0
        %650 = vmatpush1.bf16.xpose.msra.mxu0 0
        %651 = vmatprep.subr.bf16.mxu0 0
        %652 = vmatpush1.bf16.xpose.msra.mxu0 0
        %653 = vmatprep.subr.bf16.mxu0 0
        %654 = vmatpush1.bf16.xpose.msra.mxu0 0
        %655 = vmatprep.subr.bf16.mxu0 0
        %656 = vmatpush1.bf16.xpose.msra.mxu0 0
        %657 = vmatprep.subr.bf16.mxu0 0
        %658 = vmatpush1.bf16.xpose.msra.mxu0 0
        %659 = vmatprep.subr.bf16.mxu0 0
        %660 = vmatpush1.bf16.xpose.msra.mxu0 0
        %661 = vmatprep.subr.bf16.mxu0 0
        %662 = vmatpush1.bf16.xpose.msra.mxu0 0
        %663 = vmatprep.subr.bf16.mxu0 0
        %664 = vmatpush1.bf16.xpose.msra.mxu0 0
        %665 = vmatprep.subr.bf16.mxu0 0
        %666 = vmatpush1.bf16.xpose.msra.mxu0 0
        %667 = vmatprep.subr.bf16.mxu0 0
        %668 = vmatpush1.bf16.xpose.msra.mxu0 0
        %669 = vmatprep.subr.bf16.mxu0 0
        %670 = vmatpush1.bf16.xpose.msra.mxu0 0
        %671 = vmatprep.subr.bf16.mxu0 0
        %672 = vmatpush1.bf16.xpose.msra.mxu0 0
        %673 = vmatprep.mubr.bf16.mxu0 0
        %674 = vmatmul.mubr.bf16.gmra.mrb[0].mxu0 %v636
        %v675 = vpop.f32.mrb[0].mxu0
        %v676 = vadd.f32 0.0, %v675
        %v677 = vpop.f32.mrb[0].mxu0
        %v678 = vpop.f32.mrb[0].mxu0
        %v679 = vadd.f32 0.0, %v678
        %v680 = vpop.f32.mrb[0].mxu0
        %681 = vdwg.mxu0
        %682 = vrot.lane.b32.xlu0 %v578, 96
        %v683 = vpop.permute.xlu0 %682
        %684 = vrot.lane.b32.xlu0 %v578, 32
        %v685 = vpop.permute.xlu0 %684
        %v687 = vsel %vm583, %v683, 0
        %v690 = vsel %vm583, %v685, 0
        %692 = vmatprep.subr.bf16.mxu0 0
        %693 = vmatpush1.bf16.xpose.msra.mxu0 %v690
        %694 = vmatprep.subr.bf16.mxu0 0
        %695 = vmatpush1.bf16.xpose.msra.mxu0 0
        %696 = vmatprep.subr.bf16.mxu0 0
        %697 = vmatpush1.bf16.xpose.msra.mxu0 0
        %698 = vmatprep.subr.bf16.mxu0 0
        %699 = vmatpush1.bf16.xpose.msra.mxu0 0
        %700 = vmatprep.subr.bf16.mxu0 0
        %701 = vmatpush1.bf16.xpose.msra.mxu0 0
        %702 = vmatprep.subr.bf16.mxu0 0
        %703 = vmatpush1.bf16.xpose.msra.mxu0 0
        %704 = vmatprep.subr.bf16.mxu0 0
        %705 = vmatpush1.bf16.xpose.msra.mxu0 0
        %706 = vmatprep.subr.bf16.mxu0 0
        %707 = vmatpush1.bf16.xpose.msra.mxu0 0
        %708 = vmatprep.subr.bf16.mxu0 0
        %709 = vmatpush1.bf16.xpose.msra.mxu0 0
        %710 = vmatprep.subr.bf16.mxu0 0
        %711 = vmatpush1.bf16.xpose.msra.mxu0 0
        %712 = vmatprep.subr.bf16.mxu0 0
        %713 = vmatpush1.bf16.xpose.msra.mxu0 0
        %714 = vmatprep.subr.bf16.mxu0 0
        %715 = vmatpush1.bf16.xpose.msra.mxu0 0
        %716 = vmatprep.subr.bf16.mxu0 0
        %717 = vmatpush1.bf16.xpose.msra.mxu0 0
        %718 = vmatprep.subr.bf16.mxu0 0
        %719 = vmatpush1.bf16.xpose.msra.mxu0 0
        %720 = vmatprep.subr.bf16.mxu0 0
        %721 = vmatpush1.bf16.xpose.msra.mxu0 0
        %722 = vmatprep.subr.bf16.mxu0 0
        %723 = vmatpush1.bf16.xpose.msra.mxu0 0
        %724 = vmatprep.mubr.bf16.mxu0 0
        %725 = vmatmul.mubr.bf16.gmra.mrb[0].mxu0 %v687
        %v726 = vpop.f32.mrb[0].mxu0
        %v727 = vadd.f32 0.0, %v726
        %v728 = vpop.f32.mrb[0].mxu0
        %v729 = vpop.f32.mrb[0].mxu0
        %v730 = vadd.f32 0.0, %v729
        %v731 = vpop.f32.mrb[0].mxu0
        %732 = vdwg.mxu0
        %733 = vrot.lane.b32.xlu0 %v578, 80
        %v734 = vpop.permute.xlu0 %733
        %735 = vrot.lane.b32.xlu0 %v578, 16
        %v736 = vpop.permute.xlu0 %735
        %v738 = vsel %vm583, %v734, 0
        %v741 = vsel %vm583, %v736, 0
        %743 = vmatprep.subr.bf16.mxu0 0
        %744 = vmatpush1.bf16.xpose.msra.mxu0 %v741
        %745 = vmatprep.subr.bf16.mxu0 0
        %746 = vmatpush1.bf16.xpose.msra.mxu0 0
        %747 = vmatprep.subr.bf16.mxu0 0
        %748 = vmatpush1.bf16.xpose.msra.mxu0 0
        %749 = vmatprep.subr.bf16.mxu0 0
        %750 = vmatpush1.bf16.xpose.msra.mxu0 0
        %751 = vmatprep.subr.bf16.mxu0 0
        %752 = vmatpush1.bf16.xpose.msra.mxu0 0
        %753 = vmatprep.subr.bf16.mxu0 0
        %754 = vmatpush1.bf16.xpose.msra.mxu0 0
        %755 = vmatprep.subr.bf16.mxu0 0
        %756 = vmatpush1.bf16.xpose.msra.mxu0 0
        %757 = vmatprep.subr.bf16.mxu0 0
        %758 = vmatpush1.bf16.xpose.msra.mxu0 0
        %759 = vmatprep.subr.bf16.mxu0 0
        %760 = vmatpush1.bf16.xpose.msra.mxu0 0
        %761 = vmatprep.subr.bf16.mxu0 0
        %762 = vmatpush1.bf16.xpose.msra.mxu0 0
        %763 = vmatprep.subr.bf16.mxu0 0
        %764 = vmatpush1.bf16.xpose.msra.mxu0 0
        %765 = vmatprep.subr.bf16.mxu0 0
        %766 = vmatpush1.bf16.xpose.msra.mxu0 0
        %767 = vmatprep.subr.bf16.mxu0 0
        %768 = vmatpush1.bf16.xpose.msra.mxu0 0
        %769 = vmatprep.subr.bf16.mxu0 0
        %770 = vmatpush1.bf16.xpose.msra.mxu0 0
        %771 = vmatprep.subr.bf16.mxu0 0
        %772 = vmatpush1.bf16.xpose.msra.mxu0 0
        %773 = vmatprep.subr.bf16.mxu0 0
        %774 = vmatpush1.bf16.xpose.msra.mxu0 0
        %775 = vmatprep.mubr.bf16.mxu0 0
        %776 = vmatmul.mubr.bf16.gmra.mrb[0].mxu0 %v738
        %v777 = vpop.f32.mrb[0].mxu0
        %v778 = vadd.f32 0.0, %v777
        %v779 = vpop.f32.mrb[0].mxu0
        %v780 = vpop.f32.mrb[0].mxu0
        %v781 = vadd.f32 0.0, %v780
        %v782 = vpop.f32.mrb[0].mxu0
        %783 = vdwg.mxu0
        %v784 = vlaneseq
        %v785 = vshrl.u32 %v784, 7
        %v786 = vadd.s32 %v785, 8
        %v787 = vlaneseq
        %v788 = vand.u32 %v787, 127
        %vm789 = vcmp.le.s32.totalorder %v788, %v785
        %vm790 = vcmp.le.s32.totalorder %v788, %v786
        %v791 = vsel %vm789, 0.0, -1e+30
        %v792 = vsel %vm790, 0.0, -1e+30
        %v793 = vadd.f32 %v625, %v791
        %v794 = vadd.f32 %v628, %v792
        %v795 = vadd.f32 %v676, %v791
        %v796 = vadd.f32 %v679, %v792
        %v797 = vadd.f32 %v727, %v791
        %v798 = vadd.f32 %v730, %v792
        %v799 = vadd.f32 %v778, %v791
        %v800 = vadd.f32 %v781, %v792
        %v801 = vsel %vm583, %v793, -inf
        %802 = vmax.xlane.f32.xlu0 %v801
        %v803 = vpop.xlane.xlu0 %802
        %v804 = vsel %vm583, %v794, -inf
        %805 = vmax.xlane.f32.xlu0 %v804
        %v806 = vpop.xlane.xlu0 %805
        %v807 = vsel %vm583, %v795, -inf
        %808 = vmax.xlane.f32.xlu0 %v807
        %v809 = vpop.xlane.xlu0 %808
        %v810 = vsel %vm583, %v796, -inf
        %811 = vmax.xlane.f32.xlu0 %v810
        %v812 = vpop.xlane.xlu0 %811
        %v813 = vsel %vm583, %v797, -inf
        %814 = vmax.xlane.f32.xlu0 %v813
        %v815 = vpop.xlane.xlu0 %814
        %v816 = vsel %vm583, %v798, -inf
        %817 = vmax.xlane.f32.xlu0 %v816
        %v818 = vpop.xlane.xlu0 %817
        %v819 = vsel %vm583, %v799, -inf
        %820 = vmax.xlane.f32.xlu0 %v819
        %v821 = vpop.xlane.xlu0 %820
        %v822 = vsel %vm583, %v800, -inf
        %823 = vmax.xlane.f32.xlu0 %v822
        %v824 = vpop.xlane.xlu0 %823
        %v825 = vsub.f32 %v793, %v803
        %v826 = vsub.f32 %v794, %v806
        %v827 = vsub.f32 %v795, %v809
        %v828 = vsub.f32 %v796, %v812
        %v829 = vsub.f32 %v797, %v815
        %v830 = vsub.f32 %v798, %v818
        %v831 = vsub.f32 %v799, %v821
        %v832 = vsub.f32 %v800, %v824
        %v833 = vmul.f32 %v825, 1.442695
        %v834 = vpow.pop %v833
        %v835 = vmul.f32 %v826, 1.442695
        %v836 = vpow.pop %v835
        %v837 = vmul.f32 %v827, 1.442695
        %v838 = vpow.pop %v837
        %v839 = vmul.f32 %v828, 1.442695
        %v840 = vpow.pop %v839
        %v841 = vmul.f32 %v829, 1.442695
        %v842 = vpow.pop %v841
        %v843 = vmul.f32 %v830, 1.442695
        %v844 = vpow.pop %v843
        %v845 = vmul.f32 %v831, 1.442695
        %v846 = vpow.pop %v845
        %v847 = vmul.f32 %v832, 1.442695
        %v848 = vpow.pop %v847
        %v849 = vsel %vm583, %v834, 0.0
        %850 = vadd.xlane.f32.xlu0 %v849
        %v851 = vpop.xlane.xlu0 %850
        %v852 = vsel %vm583, %v836, 0.0
        %853 = vadd.xlane.f32.xlu0 %v852
        %v854 = vpop.xlane.xlu0 %853
        %v855 = vsel %vm583, %v838, 0.0
        %856 = vadd.xlane.f32.xlu0 %v855
        %v857 = vpop.xlane.xlu0 %856
        %v858 = vsel %vm583, %v840, 0.0
        %859 = vadd.xlane.f32.xlu0 %v858
        %v860 = vpop.xlane.xlu0 %859
        %v861 = vsel %vm583, %v842, 0.0
        %862 = vadd.xlane.f32.xlu0 %v861
        %v863 = vpop.xlane.xlu0 %862
        %v864 = vsel %vm583, %v844, 0.0
        %865 = vadd.xlane.f32.xlu0 %v864
        %v866 = vpop.xlane.xlu0 %865
        %v867 = vsel %vm583, %v846, 0.0
        %868 = vadd.xlane.f32.xlu0 %v867
        %v869 = vpop.xlane.xlu0 %868
        %v870 = vsel %vm583, %v848, 0.0
        %871 = vadd.xlane.f32.xlu0 %v870
        %v872 = vpop.xlane.xlu0 %871
        %v873 = vrcp.pop %v851
        %v874 = vrcp.pop %v854
        %v875 = vrcp.pop %v857
        %v876 = vrcp.pop %v860
        %v877 = vrcp.pop %v863
        %v878 = vrcp.pop %v866
        %v879 = vrcp.pop %v869
        %v880 = vrcp.pop %v872
        %v881 = vmul.f32 %v834, %v873
        %v882 = vmul.f32 %v836, %v874
        %v883 = vmul.f32 %v838, %v875
        %v884 = vmul.f32 %v840, %v876
        %v885 = vmul.f32 %v842, %v877
        %v886 = vmul.f32 %v844, %v878
        %v887 = vmul.f32 %v846, %v879
        %v888 = vmul.f32 %v848, %v880
        %v889 = vpack.c.bf16 %v882, %v881
        %v890 = vpack.c.bf16 %v884, %v883
        %v891 = vpack.c.bf16 %v886, %v885
        %v892 = vpack.c.bf16 %v888, %v887
        %v894 = vsel %vm583, %v889, 0
        %896 = vmatprep.subr.bf16.mxu0 0
        %897 = vmatpush1.bf16.msra.mxu0 %v579
        %898 = vmatprep.subr.bf16.mxu0 0
        %899 = vmatpush1.bf16.msra.mxu0 0
        %900 = vmatprep.subr.bf16.mxu0 0
        %901 = vmatpush1.bf16.msra.mxu0 0
        %902 = vmatprep.subr.bf16.mxu0 0
        %903 = vmatpush1.bf16.msra.mxu0 0
        %904 = vmatprep.subr.bf16.mxu0 0
        %905 = vmatpush1.bf16.msra.mxu0 0
        %906 = vmatprep.subr.bf16.mxu0 0
        %907 = vmatpush1.bf16.msra.mxu0 0
        %908 = vmatprep.subr.bf16.mxu0 0
        %909 = vmatpush1.bf16.msra.mxu0 0
        %910 = vmatprep.subr.bf16.mxu0 0
        %911 = vmatpush1.bf16.msra.mxu0 0
        %912 = vmatprep.subr.bf16.mxu0 0
        %913 = vmatpush1.bf16.msra.mxu0 0
        %914 = vmatprep.subr.bf16.mxu0 0
        %915 = vmatpush1.bf16.msra.mxu0 0
        %916 = vmatprep.subr.bf16.mxu0 0
        %917 = vmatpush1.bf16.msra.mxu0 0
        %918 = vmatprep.subr.bf16.mxu0 0
        %919 = vmatpush1.bf16.msra.mxu0 0
        %920 = vmatprep.subr.bf16.mxu0 0
        %921 = vmatpush1.bf16.msra.mxu0 0
        %922 = vmatprep.subr.bf16.mxu0 0
        %923 = vmatpush1.bf16.msra.mxu0 0
        %924 = vmatprep.subr.bf16.mxu0 0
        %925 = vmatpush1.bf16.msra.mxu0 0
        %926 = vmatprep.subr.bf16.mxu0 0
        %927 = vmatpush1.bf16.msra.mxu0 0
        %928 = vmatprep.mubr.bf16.mxu0 0
        %929 = vmatmul.mubr.bf16.gmra.mrb[0].mxu0 %v894
        %v930 = vpop.f32.mrb[0].mxu0
        %v931 = vadd.f32 0.0, %v930
        %v932 = vpop.f32.mrb[0].mxu0
        %v933 = vpop.f32.mrb[0].mxu0
        %v934 = vadd.f32 0.0, %v933
        %v935 = vpop.f32.mrb[0].mxu0
        %936 = vdwg.mxu0
        %937 = vst.msk [vmem:[#allocation2] sm:$0xff] %vm583, %v931
        %938 = vst.msk [vmem:[#allocation2 + $0x8] sm:$0xff] %vm583, %v934
        %940 = vrot.lane.b32.xlu0 %v579, 112
        %v941 = vpop.permute.xlu0 %940
        %v944 = vsel %vm583, %v890, 0
        %946 = vmatprep.subr.bf16.mxu0 0
        %947 = vmatpush1.bf16.msra.mxu0 %v941
        %948 = vmatprep.subr.bf16.mxu0 0
        %949 = vmatpush1.bf16.msra.mxu0 0
        %950 = vmatprep.subr.bf16.mxu0 0
        %951 = vmatpush1.bf16.msra.mxu0 0
        %952 = vmatprep.subr.bf16.mxu0 0
        %953 = vmatpush1.bf16.msra.mxu0 0
        %954 = vmatprep.subr.bf16.mxu0 0
        %955 = vmatpush1.bf16.msra.mxu0 0
        %956 = vmatprep.subr.bf16.mxu0 0
        %957 = vmatpush1.bf16.msra.mxu0 0
        %958 = vmatprep.subr.bf16.mxu0 0
        %959 = vmatpush1.bf16.msra.mxu0 0
        %960 = vmatprep.subr.bf16.mxu0 0
        %961 = vmatpush1.bf16.msra.mxu0 0
        %962 = vmatprep.subr.bf16.mxu0 0
        %963 = vmatpush1.bf16.msra.mxu0 0
        %964 = vmatprep.subr.bf16.mxu0 0
        %965 = vmatpush1.bf16.msra.mxu0 0
        %966 = vmatprep.subr.bf16.mxu0 0
        %967 = vmatpush1.bf16.msra.mxu0 0
        %968 = vmatprep.subr.bf16.mxu0 0
        %969 = vmatpush1.bf16.msra.mxu0 0
        %970 = vmatprep.subr.bf16.mxu0 0
        %971 = vmatpush1.bf16.msra.mxu0 0
        %972 = vmatprep.subr.bf16.mxu0 0
        %973 = vmatpush1.bf16.msra.mxu0 0
        %974 = vmatprep.subr.bf16.mxu0 0
        %975 = vmatpush1.bf16.msra.mxu0 0
        %976 = vmatprep.subr.bf16.mxu0 0
        %977 = vmatpush1.bf16.msra.mxu0 0
        %978 = vmatprep.mubr.bf16.mxu0 0
        %979 = vmatmul.mubr.bf16.gmra.mrb[0].mxu0 %v944
        %v980 = vpop.f32.mrb[0].mxu0
        %v981 = vadd.f32 0.0, %v980
        %v982 = vpop.f32.mrb[0].mxu0
        %v983 = vpop.f32.mrb[0].mxu0
        %v984 = vadd.f32 0.0, %v983
        %v985 = vpop.f32.mrb[0].mxu0
        %986 = vdwg.mxu0
        %989 = vrot.lane.b32.xlu0 %v981, 16
        %v990 = vpop.permute.xlu0 %989
        %991 = vrot.lane.b32.xlu0 %v984, 16
        %v992 = vpop.permute.xlu0 %991
        %vm995 = vcmask 261248
        %996 = vst.msk [vmem:[#allocation2] sm:$0xff] %vm995, %v990
        %997 = vst.msk [vmem:[#allocation2 + $0x8] sm:$0xff] %vm995, %v992
        %998 = vrot.lane.b32.xlu0 %v579, 96
        %v999 = vpop.permute.xlu0 %998
        %v1002 = vsel %vm583, %v891, 0
        %1004 = vmatprep.subr.bf16.mxu0 0
        %1005 = vmatpush1.bf16.msra.mxu0 %v999
        %1006 = vmatprep.subr.bf16.mxu0 0
        %1007 = vmatpush1.bf16.msra.mxu0 0
        %1008 = vmatprep.subr.bf16.mxu0 0
        %1009 = vmatpush1.bf16.msra.mxu0 0
        %1010 = vmatprep.subr.bf16.mxu0 0
        %1011 = vmatpush1.bf16.msra.mxu0 0
        %1012 = vmatprep.subr.bf16.mxu0 0
        %1013 = vmatpush1.bf16.msra.mxu0 0
        %1014 = vmatprep.subr.bf16.mxu0 0
        %1015 = vmatpush1.bf16.msra.mxu0 0
        %1016 = vmatprep.subr.bf16.mxu0 0
        %1017 = vmatpush1.bf16.msra.mxu0 0
        %1018 = vmatprep.subr.bf16.mxu0 0
        %1019 = vmatpush1.bf16.msra.mxu0 0
        %1020 = vmatprep.subr.bf16.mxu0 0
        %1021 = vmatpush1.bf16.msra.mxu0 0
        %1022 = vmatprep.subr.bf16.mxu0 0
        %1023 = vmatpush1.bf16.msra.mxu0 0
        %1024 = vmatprep.subr.bf16.mxu0 0
        %1025 = vmatpush1.bf16.msra.mxu0 0
        %1026 = vmatprep.subr.bf16.mxu0 0
        %1027 = vmatpush1.bf16.msra.mxu0 0
        %1028 = vmatprep.subr.bf16.mxu0 0
        %1029 = vmatpush1.bf16.msra.mxu0 0
        %1030 = vmatprep.subr.bf16.mxu0 0
        %1031 = vmatpush1.bf16.msra.mxu0 0
        %1032 = vmatprep.subr.bf16.mxu0 0
        %1033 = vmatpush1.bf16.msra.mxu0 0
        %1034 = vmatprep.subr.bf16.mxu0 0
        %1035 = vmatpush1.bf16.msra.mxu0 0
        %1036 = vmatprep.mubr.bf16.mxu0 0
        %1037 = vmatmul.mubr.bf16.gmra.mrb[0].mxu0 %v1002
        %v1038 = vpop.f32.mrb[0].mxu0
        %v1039 = vadd.f32 0.0, %v1038
        %v1040 = vpop.f32.mrb[0].mxu0
        %v1041 = vpop.f32.mrb[0].mxu0
        %v1042 = vadd.f32 0.0, %v1041
        %v1043 = vpop.f32.mrb[0].mxu0
        %1044 = vdwg.mxu0
        %1047 = vrot.lane.b32.xlu0 %v1039, 32
        %v1048 = vpop.permute.xlu0 %1047
        %1049 = vrot.lane.b32.xlu0 %v1042, 32
        %v1050 = vpop.permute.xlu0 %1049
        %vm1053 = vcmask 392448
        %1054 = vst.msk [vmem:[#allocation2] sm:$0xff] %vm1053, %v1048
        %1055 = vst.msk [vmem:[#allocation2 + $0x8] sm:$0xff] %vm1053, %v1050
        %1056 = vrot.lane.b32.xlu0 %v579, 80
        %v1057 = vpop.permute.xlu0 %1056
        %v1060 = vsel %vm583, %v892, 0
        %1062 = vmatprep.subr.bf16.mxu0 0
        %1063 = vmatpush1.bf16.msra.mxu0 %v1057
        %1064 = vmatprep.subr.bf16.mxu0 0
        %1065 = vmatpush1.bf16.msra.mxu0 0
        %1066 = vmatprep.subr.bf16.mxu0 0
        %1067 = vmatpush1.bf16.msra.mxu0 0
        %1068 = vmatprep.subr.bf16.mxu0 0
        %1069 = vmatpush1.bf16.msra.mxu0 0
        %1070 = vmatprep.subr.bf16.mxu0 0
        %1071 = vmatpush1.bf16.msra.mxu0 0
        %1072 = vmatprep.subr.bf16.mxu0 0
        %1073 = vmatpush1.bf16.msra.mxu0 0
        %1074 = vmatprep.subr.bf16.mxu0 0
        %1075 = vmatpush1.bf16.msra.mxu0 0
        %1076 = vmatprep.subr.bf16.mxu0 0
        %1077 = vmatpush1.bf16.msra.mxu0 0
        %1078 = vmatprep.subr.bf16.mxu0 0
        %1079 = vmatpush1.bf16.msra.mxu0 0
        %1080 = vmatprep.subr.bf16.mxu0 0
        %1081 = vmatpush1.bf16.msra.mxu0 0
        %1082 = vmatprep.subr.bf16.mxu0 0
        %1083 = vmatpush1.bf16.msra.mxu0 0
        %1084 = vmatprep.subr.bf16.mxu0 0
        %1085 = vmatpush1.bf16.msra.mxu0 0
        %1086 = vmatprep.subr.bf16.mxu0 0
        %1087 = vmatpush1.bf16.msra.mxu0 0
        %1088 = vmatprep.subr.bf16.mxu0 0
        %1089 = vmatpush1.bf16.msra.mxu0 0
        %1090 = vmatprep.subr.bf16.mxu0 0
        %1091 = vmatpush1.bf16.msra.mxu0 0
        %1092 = vmatprep.subr.bf16.mxu0 0
        %1093 = vmatpush1.bf16.msra.mxu0 0
        %1094 = vmatprep.mubr.bf16.mxu0 0
        %1095 = vmatmul.mubr.bf16.gmra.mrb[0].mxu0 %v1060
        %v1096 = vpop.f32.mrb[0].mxu0
        %v1097 = vadd.f32 0.0, %v1096
        %v1098 = vpop.f32.mrb[0].mxu0
        %v1099 = vpop.f32.mrb[0].mxu0
        %v1100 = vadd.f32 0.0, %v1099
        %v1101 = vpop.f32.mrb[0].mxu0
        %1102 = vdwg.mxu0
        %1105 = vrot.lane.b32.xlu0 %v1097, 48
        %v1106 = vpop.permute.xlu0 %1105
        %1107 = vrot.lane.b32.xlu0 %v1100, 48
        %v1108 = vpop.permute.xlu0 %1107
        %vm1111 = vcmask 523648
        %1112 = vst.msk [vmem:[#allocation2] sm:$0xff] %vm1111, %v1106
        %1113 = vst.msk [vmem:[#allocation2 + $0x8] sm:$0xff] %vm1111, %v1108
        %v1114 = vld [vmem:[#allocation2] sm:$0xff]
        %v1115 = vld [vmem:[#allocation2 + $0x8] sm:$0xff]
        %v1116 = vpack.c.bf16 %v1115, %v1114
        %v1117 = vld [vmem:[%s2] sm:$0xf]
        %v1118 = vld [vmem:[%s2 + $0x4] sm:$0xf]
        %v1119 = vld [vmem:[%s2 + $0x8] sm:$0xf]
        %v1120 = vld [vmem:[%s2 + $0xc] sm:$0xf]
        %v1121 = vld [vmem:[%s2 + $0x10] sm:$0xf]
        %v1122 = vld [vmem:[%s2 + $0x14] sm:$0xf]
        %v1123 = vld [vmem:[%s2 + $0x18] sm:$0xf]
        %v1124 = vld [vmem:[%s2 + $0x1c] sm:$0xf]
        %v1125 = vld [vmem:[%s3] sm:$0x1]
        %v1127 = vlaneseq
        %v1128 = vshrl.u32 %v1127, 7
        %v1129 = vsub.s32 0, %v1128
        %v1130 = vrot.slane %v1125, %v1129
        %v1140 = vunpack.c.l.b16 %v1117
        %v1141 = vunpack.c.l.b16 %v1118
        %v1142 = vunpack.c.l.b16 %v1119
        %v1143 = vunpack.c.l.b16 %v1120
        %v1144 = vunpack.c.l.b16 %v1121
        %v1145 = vunpack.c.l.b16 %v1122
        %v1146 = vunpack.c.l.b16 %v1123
        %v1147 = vunpack.c.l.b16 %v1124
        %v1148 = vpack.c.b16 %v1141, %v1140
        %v1149 = vpack.c.b16 %v1143, %v1142
        %v1150 = vpack.c.b16 %v1145, %v1144
        %v1151 = vpack.c.b16 %v1147, %v1146
        %v1157 = vsel %vm439, %v1116, 0
        %1159 = vmatprep.subr.bf16.mxu0 0
        %1160 = vmatpush1.bf16.msra.mxu0 %v1148
        %1161 = vmatprep.subr.bf16.mxu0 0
        %1162 = vmatpush1.bf16.msra.mxu0 %v1149
        %1163 = vmatprep.subr.bf16.mxu0 0
        %1164 = vmatpush1.bf16.msra.mxu0 %v1150
        %1165 = vmatprep.subr.bf16.mxu0 0
        %1166 = vmatpush1.bf16.msra.mxu0 %v1151
        %1167 = vmatprep.subr.bf16.mxu0 0
        %1168 = vmatpush1.bf16.msra.mxu0 0
        %1169 = vmatprep.subr.bf16.mxu0 0
        %1170 = vmatpush1.bf16.msra.mxu0 0
        %1171 = vmatprep.subr.bf16.mxu0 0
        %1172 = vmatpush1.bf16.msra.mxu0 0
        %1173 = vmatprep.subr.bf16.mxu0 0
        %1174 = vmatpush1.bf16.msra.mxu0 0
        %1175 = vmatprep.subr.bf16.mxu0 0
        %1176 = vmatpush1.bf16.msra.mxu0 0
        %1177 = vmatprep.subr.bf16.mxu0 0
        %1178 = vmatpush1.bf16.msra.mxu0 0
        %1179 = vmatprep.subr.bf16.mxu0 0
        %1180 = vmatpush1.bf16.msra.mxu0 0
        %1181 = vmatprep.subr.bf16.mxu0 0
        %1182 = vmatpush1.bf16.msra.mxu0 0
        %1183 = vmatprep.subr.bf16.mxu0 0
        %1184 = vmatpush1.bf16.msra.mxu0 0
        %1185 = vmatprep.subr.bf16.mxu0 0
        %1186 = vmatpush1.bf16.msra.mxu0 0
        %1187 = vmatprep.subr.bf16.mxu0 0
        %1188 = vmatpush1.bf16.msra.mxu0 0
        %1189 = vmatprep.subr.bf16.mxu0 0
        %1190 = vmatpush1.bf16.msra.mxu0 0
        %1191 = vmatprep.mubr.bf16.mxu0 0
        %1192 = vmatmul.mubr.bf16.gmra.mrb[0].mxu0 %v1157
        %v1193 = vpop.f32.mrb[0].mxu0
        %v1194 = vadd.f32 %v1130, %v1193
        %v1195 = vpop.f32.mrb[0].mxu0
        %v1196 = vpop.f32.mrb[0].mxu0
        %v1197 = vadd.f32 %v1130, %v1196
        %v1198 = vpop.f32.mrb[0].mxu0
        %1199 = vdwg.mxu0
        %v1200 = vadd.f32 %v435, %v1194
        %v1201 = vadd.f32 %v436, %v1197
        %v1202 = vld [vmem:[%s10] sm:$0x1]
        %v1203 = vld [vmem:[%s11] sm:$0x1]
        %v1204 = vsel %vm439, %v1200, 0.0
        %1205 = vadd.xlane.f32.xlu0 %v1204
        %v1206 = vpop.xlane.xlu0 %1205
        %v1207 = vsel %vm439, %v1201, 0.0
        %1208 = vadd.xlane.f32.xlu0 %v1207
        %v1209 = vpop.xlane.xlu0 %1208
        %v1210 = vmul.f32 %v1206, %v446
        %v1211 = vmul.f32 %v1209, %v446
        %v1212 = vsub.f32 %v1200, %v1210
        %v1213 = vsub.f32 %v1201, %v1211
        %v1214 = vmul.f32 %v1212, %v1212
        %v1215 = vmul.f32 %v1213, %v1213
        %v1216 = vsel %vm439, %v1214, 0.0
        %1217 = vadd.xlane.f32.xlu0 %v1216
        %v1218 = vpop.xlane.xlu0 %1217
        %v1219 = vsel %vm439, %v1215, 0.0
        %1220 = vadd.xlane.f32.xlu0 %v1219
        %v1221 = vpop.xlane.xlu0 %1220
        %v1222 = vmul.f32 %v1218, %v446
        %v1223 = vmul.f32 %v1221, %v446
        %v1224 = vadd.f32 %v1222, 1e-05
        %v1225 = vadd.f32 %v1223, 1e-05
        %v1226 = vrsqrt.pop %v1224
        %v1227 = vrsqrt.pop %v1225
        %v1228 = vmul.f32 %v1212, %v1226
        %v1229 = vmul.f32 %v1213, %v1227
        %v1231 = vlaneseq
        %v1232 = vshrl.u32 %v1231, 7
        %v1233 = vsub.s32 0, %v1232
        %v1234 = vrot.slane %v1202, %v1233
        %v1236 = vmul.f32 %v1228, %v1234
        %v1237 = vmul.f32 %v1229, %v1234
        %v1239 = vlaneseq
        %v1240 = vshrl.u32 %v1239, 7
        %v1241 = vsub.s32 0, %v1240
        %v1242 = vrot.slane %v1203, %v1241
        %v1244 = vadd.f32 %v1236, %v1242
        %v1245 = vadd.f32 %v1237, %v1242
        %v1246 = vpack.c.bf16 %v1245, %v1244
        %v1247 = vld [vmem:[%s4] sm:$0xff]
        %v1248 = vld [vmem:[%s4 + $0x8] sm:$0xff]
        %v1249 = vld [vmem:[%s4 + $0x10] sm:$0xff]
        %v1250 = vld [vmem:[%s4 + $0x18] sm:$0xff]
        %v1251 = vld [vmem:[%s4 + $0x20] sm:$0xff]
        %v1252 = vld [vmem:[%s4 + $0x28] sm:$0xff]
        %v1253 = vld [vmem:[%s4 + $0x30] sm:$0xff]
        %v1254 = vld [vmem:[%s4 + $0x38] sm:$0xff]
        %v1255 = vld [vmem:[%s5] sm:$0x3]
        %v1257 = vlaneseq
        %v1258 = vshrl.u32 %v1257, 7
        %v1259 = vsub.s32 0, %v1258
        %v1260 = vrot.slane %v1255, %v1259
        %v1261 = vlaneseq
        %v1262 = vshrl.u32 %v1261, 7
        %v1263 = vsub.s32 1, %v1262
        %v1264 = vrot.slane %v1255, %v1263
        %v1275 = vunpack.c.l.b16 %v1247
        %v1276 = vunpack.c.h.b16 %v1247
        %v1277 = vunpack.c.l.b16 %v1248
        %v1278 = vunpack.c.h.b16 %v1248
        %v1279 = vunpack.c.l.b16 %v1249
        %v1280 = vunpack.c.h.b16 %v1249
        %v1281 = vunpack.c.l.b16 %v1250
        %v1282 = vunpack.c.h.b16 %v1250
        %v1283 = vunpack.c.l.b16 %v1251
        %v1284 = vunpack.c.h.b16 %v1251
        %v1285 = vunpack.c.l.b16 %v1252
        %v1286 = vunpack.c.h.b16 %v1252
        %v1287 = vunpack.c.l.b16 %v1253
        %v1288 = vunpack.c.h.b16 %v1253
        %v1289 = vunpack.c.l.b16 %v1254
        %v1290 = vunpack.c.h.b16 %v1254
        %v1291 = vpack.c.b16 %v1277, %v1275
        %v1292 = vpack.c.b16 %v1278, %v1276
        %v1293 = vpack.c.b16 %v1281, %v1279
        %v1294 = vpack.c.b16 %v1282, %v1280
        %v1295 = vpack.c.b16 %v1285, %v1283
        %v1296 = vpack.c.b16 %v1286, %v1284
        %v1297 = vpack.c.b16 %v1289, %v1287
        %v1298 = vpack.c.b16 %v1290, %v1288
        %v1308 = vsel %vm439, %v1246, 0
        %1310 = vmatprep.subr.bf16.mxu0 %v1292
        %1311 = vmatpush1.bf16.msra.mxu0 %v1291
        %1312 = vmatprep.subr.bf16.mxu0 %v1294
        %1313 = vmatpush1.bf16.msra.mxu0 %v1293
        %1314 = vmatprep.subr.bf16.mxu0 %v1296
        %1315 = vmatpush1.bf16.msra.mxu0 %v1295
        %1316 = vmatprep.subr.bf16.mxu0 %v1298
        %1317 = vmatpush1.bf16.msra.mxu0 %v1297
        %1318 = vmatprep.subr.bf16.mxu0 0
        %1319 = vmatpush1.bf16.msra.mxu0 0
        %1320 = vmatprep.subr.bf16.mxu0 0
        %1321 = vmatpush1.bf16.msra.mxu0 0
        %1322 = vmatprep.subr.bf16.mxu0 0
        %1323 = vmatpush1.bf16.msra.mxu0 0
        %1324 = vmatprep.subr.bf16.mxu0 0
        %1325 = vmatpush1.bf16.msra.mxu0 0
        %1326 = vmatprep.subr.bf16.mxu0 0
        %1327 = vmatpush1.bf16.msra.mxu0 0
        %1328 = vmatprep.subr.bf16.mxu0 0
        %1329 = vmatpush1.bf16.msra.mxu0 0
        %1330 = vmatprep.subr.bf16.mxu0 0
        %1331 = vmatpush1.bf16.msra.mxu0 0
        %1332 = vmatprep.subr.bf16.mxu0 0
        %1333 = vmatpush1.bf16.msra.mxu0 0
        %1334 = vmatprep.subr.bf16.mxu0 0
        %1335 = vmatpush1.bf16.msra.mxu0 0
        %1336 = vmatprep.subr.bf16.mxu0 0
        %1337 = vmatpush1.bf16.msra.mxu0 0
        %1338 = vmatprep.subr.bf16.mxu0 0
        %1339 = vmatpush1.bf16.msra.mxu0 0
        %1340 = vmatprep.subr.bf16.mxu0 0
        %1341 = vmatpush1.bf16.msra.mxu0 0
        %1342 = vmatprep.mubr.bf16.mxu0 0
        %1343 = vmatmul.mubr.bf16.gmra.mrb[0].mxu0 %v1308
        %v1344 = vpop.f32.mrb[0].mxu0
        %v1345 = vadd.f32 %v1260, %v1344
        %v1346 = vpop.f32.mrb[0].mxu0
        %v1347 = vadd.f32 %v1264, %v1346
        %v1348 = vpop.f32.mrb[0].mxu0
        %v1349 = vadd.f32 %v1260, %v1348
        %v1350 = vpop.f32.mrb[0].mxu0
        %v1351 = vadd.f32 %v1264, %v1350
        %1352 = vdwg.mxu0
        %v1353 = vmax.f32 %v1345, 0.0
        %v1354 = vmax.f32 %v1347, 0.0
        %v1355 = vmax.f32 %v1349, 0.0
        %v1356 = vmax.f32 %v1351, 0.0
        %v1357 = vpack.c.bf16 %v1355, %v1353
        %v1358 = vpack.c.bf16 %v1356, %v1354
        %v1359 = vld [vmem:[%s6] sm:$0xf]
        %v1360 = vld [vmem:[%s6 + $0x4] sm:$0xf]
        %v1361 = vld [vmem:[%s6 + $0x8] sm:$0xf]
        %v1362 = vld [vmem:[%s6 + $0xc] sm:$0xf]
        %v1363 = vld [vmem:[%s6 + $0x10] sm:$0xf]
        %v1364 = vld [vmem:[%s6 + $0x14] sm:$0xf]
        %v1365 = vld [vmem:[%s6 + $0x18] sm:$0xf]
        %v1366 = vld [vmem:[%s6 + $0x1c] sm:$0xf]
        %v1367 = vld [vmem:[%s6 + $0x20] sm:$0xf]
        %v1368 = vld [vmem:[%s6 + $0x24] sm:$0xf]
        %v1369 = vld [vmem:[%s6 + $0x28] sm:$0xf]
        %v1370 = vld [vmem:[%s6 + $0x2c] sm:$0xf]
        %v1371 = vld [vmem:[%s6 + $0x30] sm:$0xf]
        %v1372 = vld [vmem:[%s6 + $0x34] sm:$0xf]
        %v1373 = vld [vmem:[%s6 + $0x38] sm:$0xf]
        %v1374 = vld [vmem:[%s6 + $0x3c] sm:$0xf]
        %v1375 = vld [vmem:[%s6 + $0x40] sm:$0xf]
        %v1376 = vld [vmem:[%s6 + $0x44] sm:$0xf]
        %v1377 = vld [vmem:[%s6 + $0x48] sm:$0xf]
        %v1378 = vld [vmem:[%s6 + $0x4c] sm:$0xf]
        %v1379 = vld [vmem:[%s6 + $0x50] sm:$0xf]
        %v1380 = vld [vmem:[%s6 + $0x54] sm:$0xf]
        %v1381 = vld [vmem:[%s6 + $0x58] sm:$0xf]
        %v1382 = vld [vmem:[%s6 + $0x5c] sm:$0xf]
        %v1383 = vld [vmem:[%s6 + $0x60] sm:$0xf]
        %v1384 = vld [vmem:[%s6 + $0x64] sm:$0xf]
        %v1385 = vld [vmem:[%s6 + $0x68] sm:$0xf]
        %v1386 = vld [vmem:[%s6 + $0x6c] sm:$0xf]
        %v1387 = vld [vmem:[%s6 + $0x70] sm:$0xf]
        %v1388 = vld [vmem:[%s6 + $0x74] sm:$0xf]
        %v1389 = vld [vmem:[%s6 + $0x78] sm:$0xf]
        %v1390 = vld [vmem:[%s6 + $0x7c] sm:$0xf]
        %v1391 = vld [vmem:[%s7] sm:$0x1]
        %v1393 = vlaneseq
        %v1394 = vshrl.u32 %v1393, 7
        %v1395 = vsub.s32 0, %v1394
        %v1396 = vrot.slane %v1391, %v1395
        %v1430 = vunpack.c.l.b16 %v1359
        %v1431 = vunpack.c.l.b16 %v1360
        %v1432 = vunpack.c.l.b16 %v1361
        %v1433 = vunpack.c.l.b16 %v1362
        %v1434 = vunpack.c.l.b16 %v1363
        %v1435 = vunpack.c.l.b16 %v1364
        %v1436 = vunpack.c.l.b16 %v1365
        %v1437 = vunpack.c.l.b16 %v1366
        %v1438 = vunpack.c.l.b16 %v1367
        %v1439 = vunpack.c.l.b16 %v1368
        %v1440 = vunpack.c.l.b16 %v1369
        %v1441 = vunpack.c.l.b16 %v1370
        %v1442 = vunpack.c.l.b16 %v1371
        %v1443 = vunpack.c.l.b16 %v1372
        %v1444 = vunpack.c.l.b16 %v1373
        %v1445 = vunpack.c.l.b16 %v1374
        %v1446 = vunpack.c.l.b16 %v1375
        %v1447 = vunpack.c.l.b16 %v1376
        %v1448 = vunpack.c.l.b16 %v1377
        %v1449 = vunpack.c.l.b16 %v1378
        %v1450 = vunpack.c.l.b16 %v1379
        %v1451 = vunpack.c.l.b16 %v1380
        %v1452 = vunpack.c.l.b16 %v1381
        %v1453 = vunpack.c.l.b16 %v1382
        %v1454 = vunpack.c.l.b16 %v1383
        %v1455 = vunpack.c.l.b16 %v1384
        %v1456 = vunpack.c.l.b16 %v1385
        %v1457 = vunpack.c.l.b16 %v1386
        %v1458 = vunpack.c.l.b16 %v1387
        %v1459 = vunpack.c.l.b16 %v1388
        %v1460 = vunpack.c.l.b16 %v1389
        %v1461 = vunpack.c.l.b16 %v1390
        %v1462 = vpack.c.b16 %v1431, %v1430
        %v1463 = vpack.c.b16 %v1433, %v1432
        %v1464 = vpack.c.b16 %v1435, %v1434
        %v1465 = vpack.c.b16 %v1437, %v1436
        %v1466 = vpack.c.b16 %v1439, %v1438
        %v1467 = vpack.c.b16 %v1441, %v1440
        %v1468 = vpack.c.b16 %v1443, %v1442
        %v1469 = vpack.c.b16 %v1445, %v1444
        %v1470 = vpack.c.b16 %v1447, %v1446
        %v1471 = vpack.c.b16 %v1449, %v1448
        %v1472 = vpack.c.b16 %v1451, %v1450
        %v1473 = vpack.c.b16 %v1453, %v1452
        %v1474 = vpack.c.b16 %v1455, %v1454
        %v1475 = vpack.c.b16 %v1457, %v1456
        %v1476 = vpack.c.b16 %v1459, %v1458
        %v1477 = vpack.c.b16 %v1461, %v1460
        %1494 = vmatprep.subr.bf16.mxu0 0
        %1495 = vmatpush1.bf16.msra.mxu0 %v1462
        %1496 = vmatprep.subr.bf16.mxu0 0
        %1497 = vmatpush1.bf16.msra.mxu0 %v1463
        %1498 = vmatprep.subr.bf16.mxu0 0
        %1499 = vmatpush1.bf16.msra.mxu0 %v1464
        %1500 = vmatprep.subr.bf16.mxu0 0
        %1501 = vmatpush1.bf16.msra.mxu0 %v1465
        %1502 = vmatprep.subr.bf16.mxu0 0
        %1503 = vmatpush1.bf16.msra.mxu0 %v1466
        %1504 = vmatprep.subr.bf16.mxu0 0
        %1505 = vmatpush1.bf16.msra.mxu0 %v1467
        %1506 = vmatprep.subr.bf16.mxu0 0
        %1507 = vmatpush1.bf16.msra.mxu0 %v1468
        %1508 = vmatprep.subr.bf16.mxu0 0
        %1509 = vmatpush1.bf16.msra.mxu0 %v1469
        %1510 = vmatprep.subr.bf16.mxu0 0
        %1511 = vmatpush1.bf16.msra.mxu0 %v1470
        %1512 = vmatprep.subr.bf16.mxu0 0
        %1513 = vmatpush1.bf16.msra.mxu0 %v1471
        %1514 = vmatprep.subr.bf16.mxu0 0
        %1515 = vmatpush1.bf16.msra.mxu0 %v1472
        %1516 = vmatprep.subr.bf16.mxu0 0
        %1517 = vmatpush1.bf16.msra.mxu0 %v1473
        %1518 = vmatprep.subr.bf16.mxu0 0
        %1519 = vmatpush1.bf16.msra.mxu0 %v1474
        %1520 = vmatprep.subr.bf16.mxu0 0
        %1521 = vmatpush1.bf16.msra.mxu0 %v1475
        %1522 = vmatprep.subr.bf16.mxu0 0
        %1523 = vmatpush1.bf16.msra.mxu0 %v1476
        %1524 = vmatprep.subr.bf16.mxu0 0
        %1525 = vmatpush1.bf16.msra.mxu0 %v1477
        %1526 = vmatprep.mubr.bf16.mxu0 %v1358
        %1527 = vmatmul.mubr.bf16.gmra.mrb[0].mxu0 %v1357
        %v1528 = vpop.f32.mrb[0].mxu0
        %v1529 = vadd.f32 %v1396, %v1528
        %v1530 = vpop.f32.mrb[0].mxu0
        %v1531 = vpop.f32.mrb[0].mxu0
        %v1532 = vadd.f32 %v1396, %v1531
        %v1533 = vpop.f32.mrb[0].mxu0
        %1534 = vdwg.mxu0
        %v1535 = vadd.f32 %v1200, %v1529
        %v1536 = vadd.f32 %v1201, %v1532
        %1537 = vst.msk [vmem:[%s431] sm:$0xff] %vm439, %v1535
        %1538 = vst.msk [vmem:[%s431 + $0x8] sm:$0xff] %vm439, %v1536
        %s1539 = sand.u32 %s294, 1
        %s1540 = scalar_lea.sflag [#allocation5], %s1539
        %s1541 = sand.u32 %s294, 1
        %s1542 = smul.addr %s1541, 16
        %s1543 = scalar_lea.vmem [#allocation6], %s1542
        // Predicated region
        $region73: #{tpu_custom_call.1} parent=67 // pred_check
          %p1544 = pneg %p304
        $region74: #{tpu_custom_call.1} parent=67 // pred_check_branch
          %1546 = sbr.rel (%p1544) target = $region76
        $region75: #{tpu_custom_call.1} parent=67 // pred_region
          %s1547 = smul.u32 2, %s29
          %s1549 = ssub.s32 256, 256
          %1550 = vsyncadd %s1540, %s1549
          %s1551 = smul.addr %s1547, 128
          %s1552 = scalar_lea.hbm %s12, %s1551
          %s1553 = sshll.u32 %s1543, 4
          %s1554 = int_to_ptr.vmem [resolvable:$true] %s1553
          %1559 = dma.vmem_to_hbm [thread:$0]  %s1554, 256, %s1552, %s1540, 128, 128, 8
        $region76: #{tpu_custom_call.1} parent=67 // pred_fallthru
          _
      $region68: #{tpu_custom_call.1} parent=5 // pred_fallthru
        _
      %p1560 = scmp.le.s32.totalorder 2, %s24
      // Predicated region
      $region77: #{tpu_custom_call.1} parent=5 // pred_check
        %p1561 = pneg %p1560
      $region78: #{tpu_custom_call.1} parent=5 // pred_check_branch
        %1563 = sbr.rel (%p1561) target = $region80
      $region79: #{tpu_custom_call.1} parent=5 // pred_region
        %s1564 = ssub.s32 %s24, 2
        // Predicated region
        $region81: #{tpu_custom_call.1} parent=79 // pred_check
          %p1565 = pneg %p310
        $region82: #{tpu_custom_call.1} parent=79 // pred_check_branch
          %1567 = sbr.rel (%p1565) target = $region84
        $region83: #{tpu_custom_call.1} parent=79 // pred_region
          %s1568 = sand.u32 %s295, 1
          %s1569 = scalar_lea.sflag [#allocation5], %s1568
          %s1570 = sand.u32 %s295, 1
          %s1571 = smul.addr %s1570, 16
          %s1572 = scalar_lea.vmem [#allocation6], %s1571
          %1573 = dma.done %s1569, 256
        $region84: #{tpu_custom_call.1} parent=79 // pred_fallthru
          _
      $region80: #{tpu_custom_call.1} parent=5 // pred_fallthru
        _
    $region6: #{tpu_custom_call.1} parent=1 // loop_footer
      %s28 = sadd.s32 1, %s24
    $region7: #{tpu_custom_call.1} parent=1 // loop_footer_branch
      %23 = sbr.rel target = $region3
    $region8: #{tpu_custom_call.1} parent=1 // loop_exit
      _
    %1574 = vsyncpa [#allocation4], 1
    %s1575 = scalar_lea.sflag [#allocation4], 1
    %1576 = vsyncpa %s1575, 1
    %1577 = vsyncpa [#allocation5], 1
    %s1578 = scalar_lea.sflag [#allocation5], 1
    %1579 = vsyncpa %s1578, 1

</llo_original>
